<compile_context>
chip_gen: v7x
topology: tpu7x:2x2x1
jax: 0.10.0
libtpu: 0.0.40
codegen_flags: <defaults>
</compile_context>

<pallas_src>
import jax
import jax.numpy as jnp
import numpy as np
from jax.experimental import pallas as pl
from jax.experimental.pallas import tpu as pltpu


# ----------------------------------------------------------------------------
# in-kernel helpers
# ----------------------------------------------------------------------------
def _log_softmax_col(x):          # softmax over the first (sublane) axis of (C, 1)
    m = jnp.max(x, axis=0, keepdims=True)
    z = x - m
    return z - jnp.log(jnp.sum(jnp.exp(z), axis=0, keepdims=True))


def _softplus(x):                 # stable softplus
    return jnp.maximum(x, 0.0) + jnp.log(1.0 + jnp.exp(-jnp.abs(x)))


# ----------------------------------------------------------------------------
# Fused kernel: conv(im2col, bias folded) + ReLU + global max pool + heads
#               + closed-form grad attention + batch-summed distillation loss,
#               both nets, all batches, ONE grid step, ONE lane-dense output.
# ----------------------------------------------------------------------------
def make_fused_kernel(alpha, mimic_alpha, T, K, Cf, B, HW, out_rows):
    alpha = float(alpha)
    mimic_alpha = float(mimic_alpha)
    T = float(T)

    def kernel(patches_ref, wconv_ref, headpack_ref, out_ref):
        # patches_ref : (Kp, B*HW)     im2col for ALL batches; row 9*Cin = ones (bias fold),
        #                              trailing rows zero-padded to a multiple of 8.
        # wconv_ref   : (2*Cf, Kp)     [student ; teacher] conv weights, bias as col 9*Cin.
        # headpack_ref: (2, Cf+2K, L)  per net: rows[0:Cf]    = W  = [wb^T | wf^T]    (Cf, 2K)
        #                                       rows[Cf:Cf+2K]= [W^T | bias]          (2K, Cf+1)
        # out_ref     : (out_rows,128) single slab: rows[0:K] lanes[0:B] = student bce
        #                              (class-major), row K lane 0 = total loss.

        out_ref[...] = jnp.zeros((out_rows, 128), jnp.float32)   # unmasked 128-lane init

        # --- conv + ReLU for BOTH nets and ALL batches: ONE im2col MXU matmul ---
        feat_all = jnp.maximum(
            jnp.dot(wconv_ref[...], patches_ref[...],
                    preferred_element_type=jnp.float32),
            0.0)                                                  # (2*Cf, B*HW)

        # --- head parameters (both nets), loaded once and value-sliced ---------
        W, WT, bT = [], [], []
        for n in range(2):
            packn = headpack_ref[n]                               # (Cf+2K, L)
            W.append(packn[0:Cf, 0:2 * K])                        # (Cf, 2K)
            WT.append(packn[Cf:Cf + 2 * K, 0:Cf])                 # (2K, Cf)
            bT.append(packn[Cf:Cf + 2 * K, Cf:Cf + 1])            # (2K, 1)

        zero = jnp.zeros((1, 1), jnp.float32)
        select_acc, kd1_acc, kd2_acc, mimic_acc = zero, zero, zero, zero

        for b in range(B):                        # unrolled; B is small & static
            feat_b = feat_all[:, b * HW:(b + 1) * HW]             # (2Cf, HW), lane-aligned
            pool_b = jnp.max(feat_b, axis=1, keepdims=True)       # (2Cf, 1) global max pool

            per_net = []
            for n in range(2):                    # 0 = student, 1 = teacher
                pool_nb = pool_b[n * Cf:(n + 1) * Cf, :]          # (Cf, 1)
                # both heads in one MXU matvec: rows [0:K]=bce, [K:2K]=fc
                heads = jnp.dot(WT[n], pool_nb,
                                preferred_element_type=jnp.float32) + bT[n]   # (2K,1)
                bce = heads[0:K, :]
                fc = heads[K:2 * K, :]

                # closed-form dKL/d(pooled) (== spatial sum of max-pool backward scatter)
                logp = _log_softmax_col(bce)
                logq = _log_softmax_col(fc)
                p = jnp.exp(logp)
                q = jnp.exp(logq)
                kl = jnp.sum(q * (logq - logp), axis=0, keepdims=True)   # (1,1)
                g_bce = p - q
                g_fc = q * (logq - logp - kl)
                g_cat = jnp.concatenate([g_bce, g_fc], axis=0)           # (2K,1)
                grad_pool = jnp.dot(W[n], g_cat,
                                    preferred_element_type=jnp.float32)  # (Cf,1) MXU

                # channel attention: softmax over channels, weighted spatial map
                w_ch = jnp.exp(_log_softmax_col(grad_pool))              # (Cf,1)
                feat_nb = feat_b[n * Cf:(n + 1) * Cf, :]                 # (Cf, HW)
                att = jnp.sum(w_ch * feat_nb, axis=0, keepdims=True)     # (1, HW) lane-dense
                per_net.append((bce, fc, att))

            s_bce, s_fc, s_att = per_net[0]
            t_bce, t_fc, t_att = per_net[1]

            out_ref[0:K, b:b + 1] = s_bce            # student bce logits, column b

            # --- distillation-loss partials, accumulated over the batch in-kernel ---
            log_ps = _log_softmax_col(s_fc / T)
            log_qt = _log_softmax_col(t_fc / T)
            qt = jnp.exp(log_qt)
            select_acc = select_acc + jnp.sum(qt * (log_qt - log_ps), keepdims=True)

            sz = s_bce / T
            tz = t_bce / T
            ts = jax.nn.sigmoid(tz)
            # log ts - log ss = sp(-sz)-sp(-tz); log(1-ts)-log(1-ss) = sp(sz)-sp(tz)
            kd1_acc = kd1_acc + jnp.sum(ts * (_softplus(-sz) - _softplus(-tz)),
                                        keepdims=True)
            kd2_acc = kd2_acc + jnp.sum((1.0 - ts) * (_softplus(sz) - _softplus(tz)),
                                        keepdims=True)
            mimic_acc = mimic_acc + jnp.sum((s_att - t_att) ** 2, keepdims=True)

        select_kd = select_acc * (T * T) * alpha
        kd = (kd1_acc + kd2_acc) * 0.5 * (T * T) / K
        mimic = mimic_acc * (mimic_alpha / (B * HW))
        out_ref[K:K + 1, 0:1] = (select_kd + kd) * 0.5 + mimic    # loss[0] of the module

    return kernel


# ----------------------------------------------------------------------------
# Full forward (mirrors SelectiveFCKDAtt.forward, training path)
# ----------------------------------------------------------------------------
def selective_fc_kd_att_forward(x_nchw, target, s_params, t_params,
                                alpha=1.0, mimic_alpha=0.1, temperature=3.0,
                                training=True):
    del target  # unused by the reference forward (cls_balance=0 path)
    B, Cin, H, W = x_nchw.shape
    HW = H * W
    Cf = s_params["conv_w"].shape[-1]
    K = s_params["wb"].shape[0]
    assert Cf % 8 == 0 and (2 * K) % 8 == 0
    assert HW % 128 == 0 and B <= 128

    Kp = ((9 * Cin + 1 + 7) // 8) * 8            # im2col K dim (bias row), padded to x8
    L = max(2 * K, Cf + 1)                       # head-pack lane extent
    out_rows = ((K + 1 + 7) // 8) * 8            # output slab rows

    x = x_nchw.astype(jnp.float32)

    # ---- im2col patches built directly in (9*Cin, B*HW) order (no minor-dim
    #      transpose after stacking); ones row folds the conv bias ------------
    xT = jnp.transpose(x, (1, 0, 2, 3))                           # (Cin, B, H, W)
    xpad = jnp.pad(xT, ((0, 0), (0, 0), (1, 1), (1, 1)))
    taps = [xpad[:, :, dh:dh + H, dw:dw + W] for dh in range(3) for dw in range(3)]
    pat = jnp.stack(taps, axis=0).reshape(9 * Cin, B * HW)        # (9Cin, B*HW)
    patches = jnp.concatenate(
        [pat,
         jnp.ones((1, B * HW), jnp.float32),
         jnp.zeros((Kp - 9 * Cin - 1, B * HW), jnp.float32)], axis=0)   # (Kp, B*HW)

    def conv_pack(p):
        w = p["conv_w"].reshape(9 * Cin, Cf).T.astype(jnp.float32)      # (Cf, 9Cin)
        bcol = p["conv_b"].reshape(Cf, 1).astype(jnp.float32)
        pad = jnp.zeros((Cf, Kp - 9 * Cin - 1), jnp.float32)
        return jnp.concatenate([w, bcol, pad], axis=1)                  # (Cf, Kp)

    wconv = jnp.concatenate([conv_pack(s_params), conv_pack(t_params)], axis=0)  # (2Cf, Kp)

    def head_pack(p):
        Wn = jnp.concatenate([p["wb"].T, p["wf"].T], axis=1).astype(jnp.float32)  # (Cf, 2K)
        Wn = jnp.pad(Wn, ((0, 0), (0, L - 2 * K)))
        WTb = jnp.concatenate(
            [jnp.concatenate([p["wb"], p["wf"]], axis=0).astype(jnp.float32),
             jnp.concatenate([p["bb"], p["bf"]], axis=0).reshape(2 * K, 1)
             .astype(jnp.float32)],
            axis=1)                                                               # (2K, Cf+1)
        WTb = jnp.pad(WTb, ((0, 0), (0, L - (Cf + 1))))
        return jnp.concatenate([Wn, WTb], axis=0)                                 # (Cf+2K, L)

    headpack = jnp.stack([head_pack(s_params), head_pack(t_params)], axis=0)      # (2,Cf+2K,L)

    kernel = make_fused_kernel(alpha, mimic_alpha, temperature, K, Cf, B, HW, out_rows)
    out = pl.pallas_call(
        kernel,
        out_shape=jax.ShapeDtypeStruct((out_rows, 128), jnp.float32),
        grid=(1,),
        in_specs=[
            pl.BlockSpec((Kp, B * HW), lambda i: (0, 0)),          # im2col patches
            pl.BlockSpec((2 * Cf, Kp), lambda i: (0, 0)),          # conv W (both nets)
            pl.BlockSpec((2, Cf + 2 * K, L), lambda i: (0, 0, 0)), # packed head params
        ],
        out_specs=pl.BlockSpec((out_rows, 128), lambda i: (0, 0)), # single lane-dense slab
        compiler_params=pltpu.CompilerParams(
            dimension_semantics=("arbitrary",)),
    )(patches, wconv, headpack)

    s_bce = jnp.transpose(out[0:K, 0:B])                 # (B, K)
    if training:
        loss = out[K, 0:B]                               # [total_loss, 0, ...]  (B,)
    else:
        # TODO(synk): eval path still runs the teacher + loss math and discards it.
        loss = jnp.zeros((B,), jnp.float32)
    return s_bce, loss


# ----------------------------------------------------------------------------
# Pure-JAX reference (uses real autodiff for the attention gradient)
# ----------------------------------------------------------------------------
def _ref_forward(x_nchw, sp, tp, alpha=1.0, mimic_alpha=0.1, T=3.0):
    x = jnp.transpose(x_nchw, (0, 2, 3, 1)).astype(jnp.float32)

    def feats(p):
        y = jax.lax.conv_general_dilated(
            x, p["conv_w"], (1, 1), "SAME",
            dimension_numbers=("NHWC", "HWIO", "NHWC"),
            precision=jax.lax.Precision.HIGHEST)
        return jnp.maximum(y + p["conv_b"], 0.0)

    def head_fn(f, p):
        pool = jnp.max(f, axis=(1, 2))
        return pool @ p["wb"].T + p["bb"], pool @ p["wf"].T + p["bf"]

    def kl_sum(f, p):
        bce, fc = head_fn(f, p)
        lp = jax.nn.log_softmax(bce, axis=1)
        q = jax.nn.softmax(fc, axis=1)
        return jnp.sum(q * (jnp.log(q) - lp))

    s_f, t_f = feats(sp), feats(tp)
    s_bce, s_fc = head_fn(s_f, sp)
    t_bce, t_fc = head_fn(t_f, tp)

    def att(f, p):
        g = jax.grad(kl_sum)(f, p)
        gp = g.sum(axis=(1, 2), keepdims=True)
        w = jax.nn.softmax(gp, axis=3)
        return jnp.sum(w * f, axis=3)

    t_att, s_att = att(t_f, tp), att(s_f, sp)
    K = sp["wb"].shape[0]
    select_kd = jnp.sum(jax.nn.softmax(t_fc / T, axis=1)
                        * (jax.nn.log_softmax(t_fc / T, axis=1)
                           - jax.nn.log_softmax(s_fc / T, axis=1))) * T ** 2
    ss, ts = jax.nn.sigmoid(s_bce / T), jax.nn.sigmoid(t_bce / T)
    kd1 = jnp.sum(ts * (jnp.log(ts) - jnp.log(ss)))
    kd2 = jnp.sum((1 - ts) * (jnp.log(1 - ts) - jnp.log(1 - ss)))
    kd = (kd1 + kd2) / 2 * T ** 2 / K
    mimic = jnp.mean((s_att - t_att) ** 2) * mimic_alpha
    loss0 = (select_kd * alpha + kd) / 2 + mimic
    return s_bce, jnp.zeros((x.shape[0],), jnp.float32).at[0].set(loss0)


# ----------------------------------------------------------------------------
def _init_net(key, cin, cf, k):
    k1, k2, k3, k4, k5, k6 = jax.random.split(key, 6)
    return dict(
        conv_w=0.1 * jax.random.normal(k1, (3, 3, cin, cf), jnp.float32),
        conv_b=0.1 * jax.random.normal(k2, (cf,), jnp.float32),
        wb=0.1 * jax.random.normal(k3, (k, cf), jnp.float32),
        bb=0.1 * jax.random.normal(k4, (k,), jnp.float32),
        wf=0.1 * jax.random.normal(k5, (k, cf), jnp.float32),
        bf=0.1 * jax.random.normal(k6, (k,), jnp.float32),
    )


if __name__ == "__main__":
    B, Cin, H, W = 2, 4, 16, 16
    Cf, K = 32, 16

    root = jax.random.PRNGKey(0)
    kx, ks, kt = jax.random.split(root, 3)
    x = jax.random.normal(kx, (B, Cin, H, W), jnp.float32)   # NCHW like PyTorch
    target = jnp.zeros((B,), jnp.int32)                       # unused, as in module
    s_params = _init_net(ks, Cin, Cf, K)
    t_params = _init_net(kt, Cin, Cf, K)

    s_bce_out, loss = selective_fc_kd_att_forward(x, target, s_params, t_params)
    jax.block_until_ready((s_bce_out, loss))

    s_bce_ref, loss_ref = _ref_forward(x, s_params, t_params)
    np.testing.assert_allclose(np.asarray(s_bce_out), np.asarray(s_bce_ref),
                               rtol=5e-3, atol=5e-3)
    np.testing.assert_allclose(np.asarray(loss), np.asarray(loss_ref),
                               rtol=5e-3, atol=5e-3)
    assert s_bce_out.shape == (B, K) and loss.shape == (B,)
    print("KERNEL_OK")
</pallas_src>

<mosaic_0001>
module attributes {stable_mosaic.version = 11 : i64} {
  func.func @kernel(%arg0: i32, %arg1: memref<40x512xf32, #tpu.memory_space<vmem>>, %arg2: memref<64x40xf32, #tpu.memory_space<vmem>>, %arg3: memref<2x64x33xf32, #tpu.memory_space<vmem>>, %arg4: memref<24x128xf32, #tpu.memory_space<vmem>>) attributes {dimension_semantics = [#tpu.dimension_semantics<arbitrary>], iteration_bounds = array<i64: 1>, scalar_prefetch = 0 : i64, scratch_operands = 0 : i64, tpu.core_type = #tpu.core_type<tc>, window_params = [{pipeline_mode = #tpu.pipeline_mode<synchronous>, transform_indices = @transform_0, window_bounds = array<i64: 40, 512>}, {pipeline_mode = #tpu.pipeline_mode<synchronous>, transform_indices = @transform_1, window_bounds = array<i64: 64, 40>}, {pipeline_mode = #tpu.pipeline_mode<synchronous>, transform_indices = @transform_2, window_bounds = array<i64: 2, 64, 33>}, {pipeline_mode = #tpu.pipeline_mode<synchronous>, transform_indices = @transform_3, window_bounds = array<i64: 24, 128>}]} {
    %cst = arith.constant 0.000000e+00 : f32
    %0 = vector.broadcast %cst : f32 to vector<24x128xf32>
    %c0 = arith.constant 0 : index
    %c0_0 = arith.constant 0 : index
    %1 = vector.load %arg4[%c0, %c0_0] : memref<24x128xf32, #tpu.memory_space<vmem>>, vector<24x128xf32>
    tpu.vector_store %arg4[%c0, %c0_0], %0 {strides = array<i32>} : memref<24x128xf32, #tpu.memory_space<vmem>>, vector<24x128xf32>,
    %c0_1 = arith.constant 0 : index
    %c0_2 = arith.constant 0 : index
    %2 = vector.load %arg2[%c0_1, %c0_2] : memref<64x40xf32, #tpu.memory_space<vmem>>, vector<64x40xf32>
    %c0_3 = arith.constant 0 : index
    %c0_4 = arith.constant 0 : index
    %3 = vector.load %arg1[%c0_3, %c0_4] : memref<40x512xf32, #tpu.memory_space<vmem>>, vector<40x512xf32>
    %cst_5 = arith.constant dense<0.000000e+00> : vector<64x512xf32>
    %4 = tpu.matmul %2, %3, %cst_5 {dimension_numbers = #tpu.dot_dimension_numbers<[1], [0], [0], [1], [0, 0, 1, 1], [], []>} : vector<64x40xf32>, vector<40x512xf32>, vector<64x512xf32> -> vector<64x512xf32>
    %cst_6 = arith.constant 0.000000e+00 : f32
    %5 = vector.broadcast %cst_6 : f32 to vector<64x512xf32>
    %6 = arith.maximumf %4, %5 : vector<64x512xf32>
    %c0_7 = arith.constant 0 : index
    %c0_8 = arith.constant 0 : index
    %c0_9 = arith.constant 0 : index
    %7 = vector.load %arg3[%c0_7, %c0_8, %c0_9] : memref<2x64x33xf32, #tpu.memory_space<vmem>>, vector<1x64x33xf32>
    %8 = vector.shape_cast %7 : vector<1x64x33xf32> to vector<64x33xf32>
    %9 = vector.extract_strided_slice %8 {offsets = [0, 0], sizes = [32, 32], strides = [1, 1]} : vector<64x33xf32> to vector<32x32xf32>
    %10 = vector.extract_strided_slice %8 {offsets = [32, 0], sizes = [32, 32], strides = [1, 1]} : vector<64x33xf32> to vector<32x32xf32>
    %11 = vector.extract_strided_slice %8 {offsets = [32, 32], sizes = [32, 1], strides = [1, 1]} : vector<64x33xf32> to vector<32x1xf32>
    %c1 = arith.constant 1 : index
    %c0_10 = arith.constant 0 : index
    %c0_11 = arith.constant 0 : index
    %12 = vector.load %arg3[%c1, %c0_10, %c0_11] : memref<2x64x33xf32, #tpu.memory_space<vmem>>, vector<1x64x33xf32>
    %13 = vector.shape_cast %12 : vector<1x64x33xf32> to vector<64x33xf32>
    %14 = vector.extract_strided_slice %13 {offsets = [0, 0], sizes = [32, 32], strides = [1, 1]} : vector<64x33xf32> to vector<32x32xf32>
    %15 = vector.extract_strided_slice %13 {offsets = [32, 0], sizes = [32, 32], strides = [1, 1]} : vector<64x33xf32> to vector<32x32xf32>
    %16 = vector.extract_strided_slice %13 {offsets = [32, 32], sizes = [32, 1], strides = [1, 1]} : vector<64x33xf32> to vector<32x1xf32>
    %cst_12 = arith.constant 0.000000e+00 : f32
    %17 = vector.broadcast %cst_12 : f32 to vector<1x1xf32>
    %18 = vector.extract_strided_slice %6 {offsets = [0, 0], sizes = [64, 256], strides = [1, 1]} : vector<64x512xf32> to vector<64x256xf32>
    %cst_13 = arith.constant dense<0xFF800000> : vector<64xf32>
    %19 = vector.multi_reduction <maximumf>, %18, %cst_13 [1] : vector<64x256xf32> to vector<64xf32>
    %20 = vector.shape_cast %19 : vector<64xf32> to vector<64x1xf32>
    %21 = vector.extract_strided_slice %20 {offsets = [0, 0], sizes = [32, 1], strides = [1, 1]} : vector<64x1xf32> to vector<32x1xf32>
    %cst_14 = arith.constant dense<0.000000e+00> : vector<32x1xf32>
    %22 = tpu.matmul %10, %21, %cst_14 {dimension_numbers = #tpu.dot_dimension_numbers<[1], [0], [0], [1], [0, 0, 1, 1], [], []>} : vector<32x32xf32>, vector<32x1xf32>, vector<32x1xf32> -> vector<32x1xf32>
    %23 = arith.addf %22, %11 : vector<32x1xf32>
    %24 = vector.extract_strided_slice %23 {offsets = [0, 0], sizes = [16, 1], strides = [1, 1]} : vector<32x1xf32> to vector<16x1xf32>
    %25 = vector.extract_strided_slice %23 {offsets = [16, 0], sizes = [16, 1], strides = [1, 1]} : vector<32x1xf32> to vector<16x1xf32>
    %cst_15 = arith.constant dense<0xFF800000> : vector<1xf32>
    %26 = vector.multi_reduction <maximumf>, %24, %cst_15 [0] : vector<16x1xf32> to vector<1xf32>
    %27 = vector.shape_cast %26 : vector<1xf32> to vector<1x1xf32>
    %28 = vector.broadcast %27 : vector<1x1xf32> to vector<16x1xf32>
    %29 = arith.subf %24, %28 : vector<16x1xf32>
    %30 = math.exp %29 : vector<16x1xf32>
    %cst_16 = arith.constant dense<0.000000e+00> : vector<1xf32>
    %31 = vector.multi_reduction <add>, %30, %cst_16 [0] : vector<16x1xf32> to vector<1xf32>
    %32 = vector.shape_cast %31 : vector<1xf32> to vector<1x1xf32>
    %33 = math.log %32 : vector<1x1xf32>
    %34 = vector.broadcast %33 : vector<1x1xf32> to vector<16x1xf32>
    %35 = arith.subf %29, %34 : vector<16x1xf32>
    %cst_17 = arith.constant dense<0xFF800000> : vector<1xf32>
    %36 = vector.multi_reduction <maximumf>, %25, %cst_17 [0] : vector<16x1xf32> to vector<1xf32>
    %37 = vector.shape_cast %36 : vector<1xf32> to vector<1x1xf32>
    %38 = vector.broadcast %37 : vector<1x1xf32> to vector<16x1xf32>
    %39 = arith.subf %25, %38 : vector<16x1xf32>
    %40 = math.exp %39 : vector<16x1xf32>
    %cst_18 = arith.constant dense<0.000000e+00> : vector<1xf32>
    %41 = vector.multi_reduction <add>, %40, %cst_18 [0] : vector<16x1xf32> to vector<1xf32>
    %42 = vector.shape_cast %41 : vector<1xf32> to vector<1x1xf32>
    %43 = math.log %42 : vector<1x1xf32>
    %44 = vector.broadcast %43 : vector<1x1xf32> to vector<16x1xf32>
    %45 = arith.subf %39, %44 : vector<16x1xf32>
    %46 = math.exp %35 : vector<16x1xf32>
    %47 = math.exp %45 : vector<16x1xf32>
    %48 = arith.subf %45, %35 : vector<16x1xf32>
    %49 = arith.mulf %47, %48 : vector<16x1xf32>
    %cst_19 = arith.constant dense<0.000000e+00> : vector<1xf32>
    %50 = vector.multi_reduction <add>, %49, %cst_19 [0] : vector<16x1xf32> to vector<1xf32>
    %51 = vector.shape_cast %50 : vector<1xf32> to vector<1x1xf32>
    %52 = arith.subf %46, %47 : vector<16x1xf32>
    %53 = arith.subf %45, %35 : vector<16x1xf32>
    %54 = vector.broadcast %51 : vector<1x1xf32> to vector<16x1xf32>
    %55 = arith.subf %53, %54 : vector<16x1xf32>
    %56 = arith.mulf %47, %55 : vector<16x1xf32>
    %57 = tpu.concatenate %52, %56 in 0 : vector<16x1xf32>, vector<16x1xf32> -> vector<32x1xf32>
    %cst_20 = arith.constant dense<0.000000e+00> : vector<32x1xf32>
    %58 = tpu.matmul %9, %57, %cst_20 {dimension_numbers = #tpu.dot_dimension_numbers<[1], [0], [0], [1], [0, 0, 1, 1], [], []>} : vector<32x32xf32>, vector<32x1xf32>, vector<32x1xf32> -> vector<32x1xf32>
    %cst_21 = arith.constant dense<0xFF800000> : vector<1xf32>
    %59 = vector.multi_reduction <maximumf>, %58, %cst_21 [0] : vector<32x1xf32> to vector<1xf32>
    %60 = vector.shape_cast %59 : vector<1xf32> to vector<1x1xf32>
    %61 = vector.broadcast %60 : vector<1x1xf32> to vector<32x1xf32>
    %62 = arith.subf %58, %61 : vector<32x1xf32>
    %63 = math.exp %62 : vector<32x1xf32>
    %cst_22 = arith.constant dense<0.000000e+00> : vector<1xf32>
    %64 = vector.multi_reduction <add>, %63, %cst_22 [0] : vector<32x1xf32> to vector<1xf32>
    %65 = vector.shape_cast %64 : vector<1xf32> to vector<1x1xf32>
    %66 = math.log %65 : vector<1x1xf32>
    %67 = vector.broadcast %66 : vector<1x1xf32> to vector<32x1xf32>
    %68 = arith.subf %62, %67 : vector<32x1xf32>
    %69 = math.exp %68 : vector<32x1xf32>
    %70 = vector.extract_strided_slice %18 {offsets = [0, 0], sizes = [32, 256], strides = [1, 1]} : vector<64x256xf32> to vector<32x256xf32>
    %71 = vector.broadcast %69 : vector<32x1xf32> to vector<32x256xf32>
    %72 = arith.mulf %71, %70 : vector<32x256xf32>
    %cst_23 = arith.constant dense<0.000000e+00> : vector<256xf32>
    %73 = vector.multi_reduction <add>, %72, %cst_23 [0] : vector<32x256xf32> to vector<256xf32>
    %74 = vector.shape_cast %73 : vector<256xf32> to vector<1x256xf32>
    %75 = vector.extract_strided_slice %20 {offsets = [32, 0], sizes = [32, 1], strides = [1, 1]} : vector<64x1xf32> to vector<32x1xf32>
    %cst_24 = arith.constant dense<0.000000e+00> : vector<32x1xf32>
    %76 = tpu.matmul %15, %75, %cst_24 {dimension_numbers = #tpu.dot_dimension_numbers<[1], [0], [0], [1], [0, 0, 1, 1], [], []>} : vector<32x32xf32>, vector<32x1xf32>, vector<32x1xf32> -> vector<32x1xf32>
    %77 = arith.addf %76, %16 : vector<32x1xf32>
    %78 = vector.extract_strided_slice %77 {offsets = [0, 0], sizes = [16, 1], strides = [1, 1]} : vector<32x1xf32> to vector<16x1xf32>
    %79 = vector.extract_strided_slice %77 {offsets = [16, 0], sizes = [16, 1], strides = [1, 1]} : vector<32x1xf32> to vector<16x1xf32>
    %cst_25 = arith.constant dense<0xFF800000> : vector<1xf32>
    %80 = vector.multi_reduction <maximumf>, %78, %cst_25 [0] : vector<16x1xf32> to vector<1xf32>
    %81 = vector.shape_cast %80 : vector<1xf32> to vector<1x1xf32>
    %82 = vector.broadcast %81 : vector<1x1xf32> to vector<16x1xf32>
    %83 = arith.subf %78, %82 : vector<16x1xf32>
    %84 = math.exp %83 : vector<16x1xf32>
    %cst_26 = arith.constant dense<0.000000e+00> : vector<1xf32>
    %85 = vector.multi_reduction <add>, %84, %cst_26 [0] : vector<16x1xf32> to vector<1xf32>
    %86 = vector.shape_cast %85 : vector<1xf32> to vector<1x1xf32>
    %87 = math.log %86 : vector<1x1xf32>
    %88 = vector.broadcast %87 : vector<1x1xf32> to vector<16x1xf32>
    %89 = arith.subf %83, %88 : vector<16x1xf32>
    %cst_27 = arith.constant dense<0xFF800000> : vector<1xf32>
    %90 = vector.multi_reduction <maximumf>, %79, %cst_27 [0] : vector<16x1xf32> to vector<1xf32>
    %91 = vector.shape_cast %90 : vector<1xf32> to vector<1x1xf32>
    %92 = vector.broadcast %91 : vector<1x1xf32> to vector<16x1xf32>
    %93 = arith.subf %79, %92 : vector<16x1xf32>
    %94 = math.exp %93 : vector<16x1xf32>
    %cst_28 = arith.constant dense<0.000000e+00> : vector<1xf32>
    %95 = vector.multi_reduction <add>, %94, %cst_28 [0] : vector<16x1xf32> to vector<1xf32>
    %96 = vector.shape_cast %95 : vector<1xf32> to vector<1x1xf32>
    %97 = math.log %96 : vector<1x1xf32>
    %98 = vector.broadcast %97 : vector<1x1xf32> to vector<16x1xf32>
    %99 = arith.subf %93, %98 : vector<16x1xf32>
    %100 = math.exp %89 : vector<16x1xf32>
    %101 = math.exp %99 : vector<16x1xf32>
    %102 = arith.subf %99, %89 : vector<16x1xf32>
    %103 = arith.mulf %101, %102 : vector<16x1xf32>
    %cst_29 = arith.constant dense<0.000000e+00> : vector<1xf32>
    %104 = vector.multi_reduction <add>, %103, %cst_29 [0] : vector<16x1xf32> to vector<1xf32>
    %105 = vector.shape_cast %104 : vector<1xf32> to vector<1x1xf32>
    %106 = arith.subf %100, %101 : vector<16x1xf32>
    %107 = arith.subf %99, %89 : vector<16x1xf32>
    %108 = vector.broadcast %105 : vector<1x1xf32> to vector<16x1xf32>
    %109 = arith.subf %107, %108 : vector<16x1xf32>
    %110 = arith.mulf %101, %109 : vector<16x1xf32>
    %111 = tpu.concatenate %106, %110 in 0 : vector<16x1xf32>, vector<16x1xf32> -> vector<32x1xf32>
    %cst_30 = arith.constant dense<0.000000e+00> : vector<32x1xf32>
    %112 = tpu.matmul %14, %111, %cst_30 {dimension_numbers = #tpu.dot_dimension_numbers<[1], [0], [0], [1], [0, 0, 1, 1], [], []>} : vector<32x32xf32>, vector<32x1xf32>, vector<32x1xf32> -> vector<32x1xf32>
    %cst_31 = arith.constant dense<0xFF800000> : vector<1xf32>
    %113 = vector.multi_reduction <maximumf>, %112, %cst_31 [0] : vector<32x1xf32> to vector<1xf32>
    %114 = vector.shape_cast %113 : vector<1xf32> to vector<1x1xf32>
    %115 = vector.broadcast %114 : vector<1x1xf32> to vector<32x1xf32>
    %116 = arith.subf %112, %115 : vector<32x1xf32>
    %117 = math.exp %116 : vector<32x1xf32>
    %cst_32 = arith.constant dense<0.000000e+00> : vector<1xf32>
    %118 = vector.multi_reduction <add>, %117, %cst_32 [0] : vector<32x1xf32> to vector<1xf32>
    %119 = vector.shape_cast %118 : vector<1xf32> to vector<1x1xf32>
    %120 = math.log %119 : vector<1x1xf32>
    %121 = vector.broadcast %120 : vector<1x1xf32> to vector<32x1xf32>
    %122 = arith.subf %116, %121 : vector<32x1xf32>
    %123 = math.exp %122 : vector<32x1xf32>
    %124 = vector.extract_strided_slice %18 {offsets = [32, 0], sizes = [32, 256], strides = [1, 1]} : vector<64x256xf32> to vector<32x256xf32>
    %125 = vector.broadcast %123 : vector<32x1xf32> to vector<32x256xf32>
    %126 = arith.mulf %125, %124 : vector<32x256xf32>
    %cst_33 = arith.constant dense<0.000000e+00> : vector<256xf32>
    %127 = vector.multi_reduction <add>, %126, %cst_33 [0] : vector<32x256xf32> to vector<256xf32>
    %128 = vector.shape_cast %127 : vector<256xf32> to vector<1x256xf32>
    %c0_34 = arith.constant 0 : index
    %c0_35 = arith.constant 0 : index
    %129 = vector.load %arg4[%c0_34, %c0_35] : memref<24x128xf32, #tpu.memory_space<vmem>>, vector<16x1xf32>
    tpu.vector_store %arg4[%c0_34, %c0_35], %24 {strides = array<i32>} : memref<24x128xf32, #tpu.memory_space<vmem>>, vector<16x1xf32>,
    %cst_36 = arith.constant 3.000000e+00 : f32
    %130 = vector.broadcast %cst_36 : f32 to vector<16x1xf32>
    %131 = arith.divf %25, %130 : vector<16x1xf32>
    %cst_37 = arith.constant dense<0xFF800000> : vector<1xf32>
    %132 = vector.multi_reduction <maximumf>, %131, %cst_37 [0] : vector<16x1xf32> to vector<1xf32>
    %133 = vector.shape_cast %132 : vector<1xf32> to vector<1x1xf32>
    %134 = vector.broadcast %133 : vector<1x1xf32> to vector<16x1xf32>
    %135 = arith.subf %131, %134 : vector<16x1xf32>
    %136 = math.exp %135 : vector<16x1xf32>
    %cst_38 = arith.constant dense<0.000000e+00> : vector<1xf32>
    %137 = vector.multi_reduction <add>, %136, %cst_38 [0] : vector<16x1xf32> to vector<1xf32>
    %138 = vector.shape_cast %137 : vector<1xf32> to vector<1x1xf32>
    %139 = math.log %138 : vector<1x1xf32>
    %140 = vector.broadcast %139 : vector<1x1xf32> to vector<16x1xf32>
    %141 = arith.subf %135, %140 : vector<16x1xf32>
    %cst_39 = arith.constant 3.000000e+00 : f32
    %142 = vector.broadcast %cst_39 : f32 to vector<16x1xf32>
    %143 = arith.divf %79, %142 : vector<16x1xf32>
    %cst_40 = arith.constant dense<0xFF800000> : vector<1xf32>
    %144 = vector.multi_reduction <maximumf>, %143, %cst_40 [0] : vector<16x1xf32> to vector<1xf32>
    %145 = vector.shape_cast %144 : vector<1xf32> to vector<1x1xf32>
    %146 = vector.broadcast %145 : vector<1x1xf32> to vector<16x1xf32>
    %147 = arith.subf %143, %146 : vector<16x1xf32>
    %148 = math.exp %147 : vector<16x1xf32>
    %cst_41 = arith.constant dense<0.000000e+00> : vector<1xf32>
    %149 = vector.multi_reduction <add>, %148, %cst_41 [0] : vector<16x1xf32> to vector<1xf32>
    %150 = vector.shape_cast %149 : vector<1xf32> to vector<1x1xf32>
    %151 = math.log %150 : vector<1x1xf32>
    %152 = vector.broadcast %151 : vector<1x1xf32> to vector<16x1xf32>
    %153 = arith.subf %147, %152 : vector<16x1xf32>
    %154 = math.exp %153 : vector<16x1xf32>
    %155 = arith.subf %153, %141 : vector<16x1xf32>
    %156 = arith.mulf %154, %155 : vector<16x1xf32>
    %157 = vector.shape_cast %156 : vector<16x1xf32> to vector<1x16x1xf32>
    %cst_42 = arith.constant dense<0.000000e+00> : vector<1xf32>
    %158 = vector.multi_reduction <add>, %157, %cst_42 [1, 2] : vector<1x16x1xf32> to vector<1xf32>
    %159 = vector.shape_cast %158 : vector<1xf32> to vector<1x1x1xf32>
    %160 = vector.extract %159[0, 0, 0] : f32 from vector<1x1x1xf32>
    %161 = vector.broadcast %160 : f32 to vector<1x1xf32>
    %162 = arith.addf %17, %161 : vector<1x1xf32>
    %cst_43 = arith.constant 3.000000e+00 : f32
    %163 = vector.broadcast %cst_43 : f32 to vector<16x1xf32>
    %164 = arith.divf %24, %163 : vector<16x1xf32>
    %cst_44 = arith.constant 3.000000e+00 : f32
    %165 = vector.broadcast %cst_44 : f32 to vector<16x1xf32>
    %166 = arith.divf %78, %165 : vector<16x1xf32>
    %167 = arith.negf %166 : vector<16x1xf32>
    %168 = math.exp %167 : vector<16x1xf32>
    %cst_45 = arith.constant 1.000000e+00 : f32
    %169 = vector.broadcast %cst_45 : f32 to vector<16x1xf32>
    %170 = arith.addf %169, %168 : vector<16x1xf32>
    %171 = arith.divf %169, %170 : vector<16x1xf32>
    %cst_46 = arith.constant 0.000000e+00 : f32
    %172 = vector.broadcast %cst_46 : f32 to vector<16x1xf32>
    %173 = arith.subf %172, %164 : vector<16x1xf32>
    %cst_47 = arith.constant 0.000000e+00 : f32
    %174 = vector.broadcast %cst_47 : f32 to vector<16x1xf32>
    %175 = arith.maximumf %173, %174 : vector<16x1xf32>
    %176 = math.absf %173 : vector<16x1xf32>
    %cst_48 = arith.constant 0.000000e+00 : f32
    %177 = vector.broadcast %cst_48 : f32 to vector<16x1xf32>
    %178 = arith.subf %177, %176 : vector<16x1xf32>
    %179 = math.exp %178 : vector<16x1xf32>
    %cst_49 = arith.constant 1.000000e+00 : f32
    %180 = vector.broadcast %cst_49 : f32 to vector<16x1xf32>
    %181 = arith.addf %180, %179 : vector<16x1xf32>
    %182 = math.log %181 : vector<16x1xf32>
    %183 = arith.addf %175, %182 : vector<16x1xf32>
    %cst_50 = arith.constant 0.000000e+00 : f32
    %184 = vector.broadcast %cst_50 : f32 to vector<16x1xf32>
    %185 = arith.subf %184, %166 : vector<16x1xf32>
    %cst_51 = arith.constant 0.000000e+00 : f32
    %186 = vector.broadcast %cst_51 : f32 to vector<16x1xf32>
    %187 = arith.maximumf %185, %186 : vector<16x1xf32>
    %188 = math.absf %185 : vector<16x1xf32>
    %cst_52 = arith.constant 0.000000e+00 : f32
    %189 = vector.broadcast %cst_52 : f32 to vector<16x1xf32>
    %190 = arith.subf %189, %188 : vector<16x1xf32>
    %191 = math.exp %190 : vector<16x1xf32>
    %cst_53 = arith.constant 1.000000e+00 : f32
    %192 = vector.broadcast %cst_53 : f32 to vector<16x1xf32>
    %193 = arith.addf %192, %191 : vector<16x1xf32>
    %194 = math.log %193 : vector<16x1xf32>
    %195 = arith.addf %187, %194 : vector<16x1xf32>
    %196 = arith.subf %183, %195 : vector<16x1xf32>
    %197 = arith.mulf %171, %196 : vector<16x1xf32>
    %198 = vector.shape_cast %197 : vector<16x1xf32> to vector<1x16x1xf32>
    %cst_54 = arith.constant dense<0.000000e+00> : vector<1xf32>
    %199 = vector.multi_reduction <add>, %198, %cst_54 [1, 2] : vector<1x16x1xf32> to vector<1xf32>
    %200 = vector.shape_cast %199 : vector<1xf32> to vector<1x1x1xf32>
    %201 = vector.extract %200[0, 0, 0] : f32 from vector<1x1x1xf32>
    %202 = vector.broadcast %201 : f32 to vector<1x1xf32>
    %203 = arith.addf %17, %202 : vector<1x1xf32>
    %cst_55 = arith.constant 1.000000e+00 : f32
    %204 = vector.broadcast %cst_55 : f32 to vector<16x1xf32>
    %205 = arith.subf %204, %171 : vector<16x1xf32>
    %cst_56 = arith.constant 0.000000e+00 : f32
    %206 = vector.broadcast %cst_56 : f32 to vector<16x1xf32>
    %207 = arith.maximumf %164, %206 : vector<16x1xf32>
    %208 = math.absf %164 : vector<16x1xf32>
    %cst_57 = arith.constant 0.000000e+00 : f32
    %209 = vector.broadcast %cst_57 : f32 to vector<16x1xf32>
    %210 = arith.subf %209, %208 : vector<16x1xf32>
    %211 = math.exp %210 : vector<16x1xf32>
    %cst_58 = arith.constant 1.000000e+00 : f32
    %212 = vector.broadcast %cst_58 : f32 to vector<16x1xf32>
    %213 = arith.addf %212, %211 : vector<16x1xf32>
    %214 = math.log %213 : vector<16x1xf32>
    %215 = arith.addf %207, %214 : vector<16x1xf32>
    %cst_59 = arith.constant 0.000000e+00 : f32
    %216 = vector.broadcast %cst_59 : f32 to vector<16x1xf32>
    %217 = arith.maximumf %166, %216 : vector<16x1xf32>
    %218 = math.absf %166 : vector<16x1xf32>
    %cst_60 = arith.constant 0.000000e+00 : f32
    %219 = vector.broadcast %cst_60 : f32 to vector<16x1xf32>
    %220 = arith.subf %219, %218 : vector<16x1xf32>
    %221 = math.exp %220 : vector<16x1xf32>
    %cst_61 = arith.constant 1.000000e+00 : f32
    %222 = vector.broadcast %cst_61 : f32 to vector<16x1xf32>
    %223 = arith.addf %222, %221 : vector<16x1xf32>
    %224 = math.log %223 : vector<16x1xf32>
    %225 = arith.addf %217, %224 : vector<16x1xf32>
    %226 = arith.subf %215, %225 : vector<16x1xf32>
    %227 = arith.mulf %205, %226 : vector<16x1xf32>
    %228 = vector.shape_cast %227 : vector<16x1xf32> to vector<1x16x1xf32>
    %cst_62 = arith.constant dense<0.000000e+00> : vector<1xf32>
    %229 = vector.multi_reduction <add>, %228, %cst_62 [1, 2] : vector<1x16x1xf32> to vector<1xf32>
    %230 = vector.shape_cast %229 : vector<1xf32> to vector<1x1x1xf32>
    %231 = vector.extract %230[0, 0, 0] : f32 from vector<1x1x1xf32>
    %232 = vector.broadcast %231 : f32 to vector<1x1xf32>
    %233 = arith.addf %17, %232 : vector<1x1xf32>
    %234 = arith.subf %74, %128 : vector<1x256xf32>
    %235 = arith.mulf %234, %234 : vector<1x256xf32>
    %236 = vector.shape_cast %235 : vector<1x256xf32> to vector<1x1x256xf32>
    %cst_63 = arith.constant dense<0.000000e+00> : vector<1xf32>
    %237 = vector.multi_reduction <add>, %236, %cst_63 [1, 2] : vector<1x1x256xf32> to vector<1xf32>
    %238 = vector.shape_cast %237 : vector<1xf32> to vector<1x1x1xf32>
    %239 = vector.extract %238[0, 0, 0] : f32 from vector<1x1x1xf32>
    %240 = vector.broadcast %239 : f32 to vector<1x1xf32>
    %241 = arith.addf %17, %240 : vector<1x1xf32>
    %242 = vector.extract_strided_slice %6 {offsets = [0, 256], sizes = [64, 256], strides = [1, 1]} : vector<64x512xf32> to vector<64x256xf32>
    %cst_64 = arith.constant dense<0xFF800000> : vector<64xf32>
    %243 = vector.multi_reduction <maximumf>, %242, %cst_64 [1] : vector<64x256xf32> to vector<64xf32>
    %244 = vector.shape_cast %243 : vector<64xf32> to vector<64x1xf32>
    %245 = vector.extract_strided_slice %244 {offsets = [0, 0], sizes = [32, 1], strides = [1, 1]} : vector<64x1xf32> to vector<32x1xf32>
    %cst_65 = arith.constant dense<0.000000e+00> : vector<32x1xf32>
    %246 = tpu.matmul %10, %245, %cst_65 {dimension_numbers = #tpu.dot_dimension_numbers<[1], [0], [0], [1], [0, 0, 1, 1], [], []>} : vector<32x32xf32>, vector<32x1xf32>, vector<32x1xf32> -> vector<32x1xf32>
    %247 = arith.addf %246, %11 : vector<32x1xf32>
    %248 = vector.extract_strided_slice %247 {offsets = [0, 0], sizes = [16, 1], strides = [1, 1]} : vector<32x1xf32> to vector<16x1xf32>
    %249 = vector.extract_strided_slice %247 {offsets = [16, 0], sizes = [16, 1], strides = [1, 1]} : vector<32x1xf32> to vector<16x1xf32>
    %cst_66 = arith.constant dense<0xFF800000> : vector<1xf32>
    %250 = vector.multi_reduction <maximumf>, %248, %cst_66 [0] : vector<16x1xf32> to vector<1xf32>
    %251 = vector.shape_cast %250 : vector<1xf32> to vector<1x1xf32>
    %252 = vector.broadcast %251 : vector<1x1xf32> to vector<16x1xf32>
    %253 = arith.subf %248, %252 : vector<16x1xf32>
    %254 = math.exp %253 : vector<16x1xf32>
    %cst_67 = arith.constant dense<0.000000e+00> : vector<1xf32>
    %255 = vector.multi_reduction <add>, %254, %cst_67 [0] : vector<16x1xf32> to vector<1xf32>
    %256 = vector.shape_cast %255 : vector<1xf32> to vector<1x1xf32>
    %257 = math.log %256 : vector<1x1xf32>
    %258 = vector.broadcast %257 : vector<1x1xf32> to vector<16x1xf32>
    %259 = arith.subf %253, %258 : vector<16x1xf32>
    %cst_68 = arith.constant dense<0xFF800000> : vector<1xf32>
    %260 = vector.multi_reduction <maximumf>, %249, %cst_68 [0] : vector<16x1xf32> to vector<1xf32>
    %261 = vector.shape_cast %260 : vector<1xf32> to vector<1x1xf32>
    %262 = vector.broadcast %261 : vector<1x1xf32> to vector<16x1xf32>
    %263 = arith.subf %249, %262 : vector<16x1xf32>
    %264 = math.exp %263 : vector<16x1xf32>
    %cst_69 = arith.constant dense<0.000000e+00> : vector<1xf32>
    %265 = vector.multi_reduction <add>, %264, %cst_69 [0] : vector<16x1xf32> to vector<1xf32>
    %266 = vector.shape_cast %265 : vector<1xf32> to vector<1x1xf32>
    %267 = math.log %266 : vector<1x1xf32>
    %268 = vector.broadcast %267 : vector<1x1xf32> to vector<16x1xf32>
    %269 = arith.subf %263, %268 : vector<16x1xf32>
    %270 = math.exp %259 : vector<16x1xf32>
    %271 = math.exp %269 : vector<16x1xf32>
    %272 = arith.subf %269, %259 : vector<16x1xf32>
    %273 = arith.mulf %271, %272 : vector<16x1xf32>
    %cst_70 = arith.constant dense<0.000000e+00> : vector<1xf32>
    %274 = vector.multi_reduction <add>, %273, %cst_70 [0] : vector<16x1xf32> to vector<1xf32>
    %275 = vector.shape_cast %274 : vector<1xf32> to vector<1x1xf32>
    %276 = arith.subf %270, %271 : vector<16x1xf32>
    %277 = arith.subf %269, %259 : vector<16x1xf32>
    %278 = vector.broadcast %275 : vector<1x1xf32> to vector<16x1xf32>
    %279 = arith.subf %277, %278 : vector<16x1xf32>
    %280 = arith.mulf %271, %279 : vector<16x1xf32>
    %281 = tpu.concatenate %276, %280 in 0 : vector<16x1xf32>, vector<16x1xf32> -> vector<32x1xf32>
    %cst_71 = arith.constant dense<0.000000e+00> : vector<32x1xf32>
    %282 = tpu.matmul %9, %281, %cst_71 {dimension_numbers = #tpu.dot_dimension_numbers<[1], [0], [0], [1], [0, 0, 1, 1], [], []>} : vector<32x32xf32>, vector<32x1xf32>, vector<32x1xf32> -> vector<32x1xf32>
    %cst_72 = arith.constant dense<0xFF800000> : vector<1xf32>
    %283 = vector.multi_reduction <maximumf>, %282, %cst_72 [0] : vector<32x1xf32> to vector<1xf32>
    %284 = vector.shape_cast %283 : vector<1xf32> to vector<1x1xf32>
    %285 = vector.broadcast %284 : vector<1x1xf32> to vector<32x1xf32>
    %286 = arith.subf %282, %285 : vector<32x1xf32>
    %287 = math.exp %286 : vector<32x1xf32>
    %cst_73 = arith.constant dense<0.000000e+00> : vector<1xf32>
    %288 = vector.multi_reduction <add>, %287, %cst_73 [0] : vector<32x1xf32> to vector<1xf32>
    %289 = vector.shape_cast %288 : vector<1xf32> to vector<1x1xf32>
    %290 = math.log %289 : vector<1x1xf32>
    %291 = vector.broadcast %290 : vector<1x1xf32> to vector<32x1xf32>
    %292 = arith.subf %286, %291 : vector<32x1xf32>
    %293 = math.exp %292 : vector<32x1xf32>
    %294 = vector.extract_strided_slice %242 {offsets = [0, 0], sizes = [32, 256], strides = [1, 1]} : vector<64x256xf32> to vector<32x256xf32>
    %295 = vector.broadcast %293 : vector<32x1xf32> to vector<32x256xf32>
    %296 = arith.mulf %295, %294 : vector<32x256xf32>
    %cst_74 = arith.constant dense<0.000000e+00> : vector<256xf32>
    %297 = vector.multi_reduction <add>, %296, %cst_74 [0] : vector<32x256xf32> to vector<256xf32>
    %298 = vector.shape_cast %297 : vector<256xf32> to vector<1x256xf32>
    %299 = vector.extract_strided_slice %244 {offsets = [32, 0], sizes = [32, 1], strides = [1, 1]} : vector<64x1xf32> to vector<32x1xf32>
    %cst_75 = arith.constant dense<0.000000e+00> : vector<32x1xf32>
    %300 = tpu.matmul %15, %299, %cst_75 {dimension_numbers = #tpu.dot_dimension_numbers<[1], [0], [0], [1], [0, 0, 1, 1], [], []>} : vector<32x32xf32>, vector<32x1xf32>, vector<32x1xf32> -> vector<32x1xf32>
    %301 = arith.addf %300, %16 : vector<32x1xf32>
    %302 = vector.extract_strided_slice %301 {offsets = [0, 0], sizes = [16, 1], strides = [1, 1]} : vector<32x1xf32> to vector<16x1xf32>
    %303 = vector.extract_strided_slice %301 {offsets = [16, 0], sizes = [16, 1], strides = [1, 1]} : vector<32x1xf32> to vector<16x1xf32>
    %cst_76 = arith.constant dense<0xFF800000> : vector<1xf32>
    %304 = vector.multi_reduction <maximumf>, %302, %cst_76 [0] : vector<16x1xf32> to vector<1xf32>
    %305 = vector.shape_cast %304 : vector<1xf32> to vector<1x1xf32>
    %306 = vector.broadcast %305 : vector<1x1xf32> to vector<16x1xf32>
    %307 = arith.subf %302, %306 : vector<16x1xf32>
    %308 = math.exp %307 : vector<16x1xf32>
    %cst_77 = arith.constant dense<0.000000e+00> : vector<1xf32>
    %309 = vector.multi_reduction <add>, %308, %cst_77 [0] : vector<16x1xf32> to vector<1xf32>
    %310 = vector.shape_cast %309 : vector<1xf32> to vector<1x1xf32>
    %311 = math.log %310 : vector<1x1xf32>
    %312 = vector.broadcast %311 : vector<1x1xf32> to vector<16x1xf32>
    %313 = arith.subf %307, %312 : vector<16x1xf32>
    %cst_78 = arith.constant dense<0xFF800000> : vector<1xf32>
    %314 = vector.multi_reduction <maximumf>, %303, %cst_78 [0] : vector<16x1xf32> to vector<1xf32>
    %315 = vector.shape_cast %314 : vector<1xf32> to vector<1x1xf32>
    %316 = vector.broadcast %315 : vector<1x1xf32> to vector<16x1xf32>
    %317 = arith.subf %303, %316 : vector<16x1xf32>
    %318 = math.exp %317 : vector<16x1xf32>
    %cst_79 = arith.constant dense<0.000000e+00> : vector<1xf32>
    %319 = vector.multi_reduction <add>, %318, %cst_79 [0] : vector<16x1xf32> to vector<1xf32>
    %320 = vector.shape_cast %319 : vector<1xf32> to vector<1x1xf32>
    %321 = math.log %320 : vector<1x1xf32>
    %322 = vector.broadcast %321 : vector<1x1xf32> to vector<16x1xf32>
    %323 = arith.subf %317, %322 : vector<16x1xf32>
    %324 = math.exp %313 : vector<16x1xf32>
    %325 = math.exp %323 : vector<16x1xf32>
    %326 = arith.subf %323, %313 : vector<16x1xf32>
    %327 = arith.mulf %325, %326 : vector<16x1xf32>
    %cst_80 = arith.constant dense<0.000000e+00> : vector<1xf32>
    %328 = vector.multi_reduction <add>, %327, %cst_80 [0] : vector<16x1xf32> to vector<1xf32>
    %329 = vector.shape_cast %328 : vector<1xf32> to vector<1x1xf32>
    %330 = arith.subf %324, %325 : vector<16x1xf32>
    %331 = arith.subf %323, %313 : vector<16x1xf32>
    %332 = vector.broadcast %329 : vector<1x1xf32> to vector<16x1xf32>
    %333 = arith.subf %331, %332 : vector<16x1xf32>
    %334 = arith.mulf %325, %333 : vector<16x1xf32>
    %335 = tpu.concatenate %330, %334 in 0 : vector<16x1xf32>, vector<16x1xf32> -> vector<32x1xf32>
    %cst_81 = arith.constant dense<0.000000e+00> : vector<32x1xf32>
    %336 = tpu.matmul %14, %335, %cst_81 {dimension_numbers = #tpu.dot_dimension_numbers<[1], [0], [0], [1], [0, 0, 1, 1], [], []>} : vector<32x32xf32>, vector<32x1xf32>, vector<32x1xf32> -> vector<32x1xf32>
    %cst_82 = arith.constant dense<0xFF800000> : vector<1xf32>
    %337 = vector.multi_reduction <maximumf>, %336, %cst_82 [0] : vector<32x1xf32> to vector<1xf32>
    %338 = vector.shape_cast %337 : vector<1xf32> to vector<1x1xf32>
    %339 = vector.broadcast %338 : vector<1x1xf32> to vector<32x1xf32>
    %340 = arith.subf %336, %339 : vector<32x1xf32>
    %341 = math.exp %340 : vector<32x1xf32>
    %cst_83 = arith.constant dense<0.000000e+00> : vector<1xf32>
    %342 = vector.multi_reduction <add>, %341, %cst_83 [0] : vector<32x1xf32> to vector<1xf32>
    %343 = vector.shape_cast %342 : vector<1xf32> to vector<1x1xf32>
    %344 = math.log %343 : vector<1x1xf32>
    %345 = vector.broadcast %344 : vector<1x1xf32> to vector<32x1xf32>
    %346 = arith.subf %340, %345 : vector<32x1xf32>
    %347 = math.exp %346 : vector<32x1xf32>
    %348 = vector.extract_strided_slice %242 {offsets = [32, 0], sizes = [32, 256], strides = [1, 1]} : vector<64x256xf32> to vector<32x256xf32>
    %349 = vector.broadcast %347 : vector<32x1xf32> to vector<32x256xf32>
    %350 = arith.mulf %349, %348 : vector<32x256xf32>
    %cst_84 = arith.constant dense<0.000000e+00> : vector<256xf32>
    %351 = vector.multi_reduction <add>, %350, %cst_84 [0] : vector<32x256xf32> to vector<256xf32>
    %352 = vector.shape_cast %351 : vector<256xf32> to vector<1x256xf32>
    %c0_85 = arith.constant 0 : index
    %c1_86 = arith.constant 1 : index
    %353 = vector.load %arg4[%c0_85, %c1_86] : memref<24x128xf32, #tpu.memory_space<vmem>>, vector<16x1xf32>
    tpu.vector_store %arg4[%c0_85, %c1_86], %248 {strides = array<i32>} : memref<24x128xf32, #tpu.memory_space<vmem>>, vector<16x1xf32>,
    %cst_87 = arith.constant 3.000000e+00 : f32
    %354 = vector.broadcast %cst_87 : f32 to vector<16x1xf32>
    %355 = arith.divf %249, %354 : vector<16x1xf32>
    %cst_88 = arith.constant dense<0xFF800000> : vector<1xf32>
    %356 = vector.multi_reduction <maximumf>, %355, %cst_88 [0] : vector<16x1xf32> to vector<1xf32>
    %357 = vector.shape_cast %356 : vector<1xf32> to vector<1x1xf32>
    %358 = vector.broadcast %357 : vector<1x1xf32> to vector<16x1xf32>
    %359 = arith.subf %355, %358 : vector<16x1xf32>
    %360 = math.exp %359 : vector<16x1xf32>
    %cst_89 = arith.constant dense<0.000000e+00> : vector<1xf32>
    %361 = vector.multi_reduction <add>, %360, %cst_89 [0] : vector<16x1xf32> to vector<1xf32>
    %362 = vector.shape_cast %361 : vector<1xf32> to vector<1x1xf32>
    %363 = math.log %362 : vector<1x1xf32>
    %364 = vector.broadcast %363 : vector<1x1xf32> to vector<16x1xf32>
    %365 = arith.subf %359, %364 : vector<16x1xf32>
    %cst_90 = arith.constant 3.000000e+00 : f32
    %366 = vector.broadcast %cst_90 : f32 to vector<16x1xf32>
    %367 = arith.divf %303, %366 : vector<16x1xf32>
    %cst_91 = arith.constant dense<0xFF800000> : vector<1xf32>
    %368 = vector.multi_reduction <maximumf>, %367, %cst_91 [0] : vector<16x1xf32> to vector<1xf32>
    %369 = vector.shape_cast %368 : vector<1xf32> to vector<1x1xf32>
    %370 = vector.broadcast %369 : vector<1x1xf32> to vector<16x1xf32>
    %371 = arith.subf %367, %370 : vector<16x1xf32>
    %372 = math.exp %371 : vector<16x1xf32>
    %cst_92 = arith.constant dense<0.000000e+00> : vector<1xf32>
    %373 = vector.multi_reduction <add>, %372, %cst_92 [0] : vector<16x1xf32> to vector<1xf32>
    %374 = vector.shape_cast %373 : vector<1xf32> to vector<1x1xf32>
    %375 = math.log %374 : vector<1x1xf32>
    %376 = vector.broadcast %375 : vector<1x1xf32> to vector<16x1xf32>
    %377 = arith.subf %371, %376 : vector<16x1xf32>
    %378 = math.exp %377 : vector<16x1xf32>
    %379 = arith.subf %377, %365 : vector<16x1xf32>
    %380 = arith.mulf %378, %379 : vector<16x1xf32>
    %381 = vector.shape_cast %380 : vector<16x1xf32> to vector<1x16x1xf32>
    %cst_93 = arith.constant dense<0.000000e+00> : vector<1xf32>
    %382 = vector.multi_reduction <add>, %381, %cst_93 [1, 2] : vector<1x16x1xf32> to vector<1xf32>
    %383 = vector.shape_cast %382 : vector<1xf32> to vector<1x1x1xf32>
    %384 = vector.extract %383[0, 0, 0] : f32 from vector<1x1x1xf32>
    %385 = vector.broadcast %384 : f32 to vector<1x1xf32>
    %386 = arith.addf %162, %385 : vector<1x1xf32>
    %cst_94 = arith.constant 3.000000e+00 : f32
    %387 = vector.broadcast %cst_94 : f32 to vector<16x1xf32>
    %388 = arith.divf %248, %387 : vector<16x1xf32>
    %cst_95 = arith.constant 3.000000e+00 : f32
    %389 = vector.broadcast %cst_95 : f32 to vector<16x1xf32>
    %390 = arith.divf %302, %389 : vector<16x1xf32>
    %391 = arith.negf %390 : vector<16x1xf32>
    %392 = math.exp %391 : vector<16x1xf32>
    %cst_96 = arith.constant 1.000000e+00 : f32
    %393 = vector.broadcast %cst_96 : f32 to vector<16x1xf32>
    %394 = arith.addf %393, %392 : vector<16x1xf32>
    %395 = arith.divf %393, %394 : vector<16x1xf32>
    %cst_97 = arith.constant 0.000000e+00 : f32
    %396 = vector.broadcast %cst_97 : f32 to vector<16x1xf32>
    %397 = arith.subf %396, %388 : vector<16x1xf32>
    %cst_98 = arith.constant 0.000000e+00 : f32
    %398 = vector.broadcast %cst_98 : f32 to vector<16x1xf32>
    %399 = arith.maximumf %397, %398 : vector<16x1xf32>
    %400 = math.absf %397 : vector<16x1xf32>
    %cst_99 = arith.constant 0.000000e+00 : f32
    %401 = vector.broadcast %cst_99 : f32 to vector<16x1xf32>
    %402 = arith.subf %401, %400 : vector<16x1xf32>
    %403 = math.exp %402 : vector<16x1xf32>
    %cst_100 = arith.constant 1.000000e+00 : f32
    %404 = vector.broadcast %cst_100 : f32 to vector<16x1xf32>
    %405 = arith.addf %404, %403 : vector<16x1xf32>
    %406 = math.log %405 : vector<16x1xf32>
    %407 = arith.addf %399, %406 : vector<16x1xf32>
    %cst_101 = arith.constant 0.000000e+00 : f32
    %408 = vector.broadcast %cst_101 : f32 to vector<16x1xf32>
    %409 = arith.subf %408, %390 : vector<16x1xf32>
    %cst_102 = arith.constant 0.000000e+00 : f32
    %410 = vector.broadcast %cst_102 : f32 to vector<16x1xf32>
    %411 = arith.maximumf %409, %410 : vector<16x1xf32>
    %412 = math.absf %409 : vector<16x1xf32>
    %cst_103 = arith.constant 0.000000e+00 : f32
    %413 = vector.broadcast %cst_103 : f32 to vector<16x1xf32>
    %414 = arith.subf %413, %412 : vector<16x1xf32>
    %415 = math.exp %414 : vector<16x1xf32>
    %cst_104 = arith.constant 1.000000e+00 : f32
    %416 = vector.broadcast %cst_104 : f32 to vector<16x1xf32>
    %417 = arith.addf %416, %415 : vector<16x1xf32>
    %418 = math.log %417 : vector<16x1xf32>
    %419 = arith.addf %411, %418 : vector<16x1xf32>
    %420 = arith.subf %407, %419 : vector<16x1xf32>
    %421 = arith.mulf %395, %420 : vector<16x1xf32>
    %422 = vector.shape_cast %421 : vector<16x1xf32> to vector<1x16x1xf32>
    %cst_105 = arith.constant dense<0.000000e+00> : vector<1xf32>
    %423 = vector.multi_reduction <add>, %422, %cst_105 [1, 2] : vector<1x16x1xf32> to vector<1xf32>
    %424 = vector.shape_cast %423 : vector<1xf32> to vector<1x1x1xf32>
    %425 = vector.extract %424[0, 0, 0] : f32 from vector<1x1x1xf32>
    %426 = vector.broadcast %425 : f32 to vector<1x1xf32>
    %427 = arith.addf %203, %426 : vector<1x1xf32>
    %cst_106 = arith.constant 1.000000e+00 : f32
    %428 = vector.broadcast %cst_106 : f32 to vector<16x1xf32>
    %429 = arith.subf %428, %395 : vector<16x1xf32>
    %cst_107 = arith.constant 0.000000e+00 : f32
    %430 = vector.broadcast %cst_107 : f32 to vector<16x1xf32>
    %431 = arith.maximumf %388, %430 : vector<16x1xf32>
    %432 = math.absf %388 : vector<16x1xf32>
    %cst_108 = arith.constant 0.000000e+00 : f32
    %433 = vector.broadcast %cst_108 : f32 to vector<16x1xf32>
    %434 = arith.subf %433, %432 : vector<16x1xf32>
    %435 = math.exp %434 : vector<16x1xf32>
    %cst_109 = arith.constant 1.000000e+00 : f32
    %436 = vector.broadcast %cst_109 : f32 to vector<16x1xf32>
    %437 = arith.addf %436, %435 : vector<16x1xf32>
    %438 = math.log %437 : vector<16x1xf32>
    %439 = arith.addf %431, %438 : vector<16x1xf32>
    %cst_110 = arith.constant 0.000000e+00 : f32
    %440 = vector.broadcast %cst_110 : f32 to vector<16x1xf32>
    %441 = arith.maximumf %390, %440 : vector<16x1xf32>
    %442 = math.absf %390 : vector<16x1xf32>
    %cst_111 = arith.constant 0.000000e+00 : f32
    %443 = vector.broadcast %cst_111 : f32 to vector<16x1xf32>
    %444 = arith.subf %443, %442 : vector<16x1xf32>
    %445 = math.exp %444 : vector<16x1xf32>
    %cst_112 = arith.constant 1.000000e+00 : f32
    %446 = vector.broadcast %cst_112 : f32 to vector<16x1xf32>
    %447 = arith.addf %446, %445 : vector<16x1xf32>
    %448 = math.log %447 : vector<16x1xf32>
    %449 = arith.addf %441, %448 : vector<16x1xf32>
    %450 = arith.subf %439, %449 : vector<16x1xf32>
    %451 = arith.mulf %429, %450 : vector<16x1xf32>
    %452 = vector.shape_cast %451 : vector<16x1xf32> to vector<1x16x1xf32>
    %cst_113 = arith.constant dense<0.000000e+00> : vector<1xf32>
    %453 = vector.multi_reduction <add>, %452, %cst_113 [1, 2] : vector<1x16x1xf32> to vector<1xf32>
    %454 = vector.shape_cast %453 : vector<1xf32> to vector<1x1x1xf32>
    %455 = vector.extract %454[0, 0, 0] : f32 from vector<1x1x1xf32>
    %456 = vector.broadcast %455 : f32 to vector<1x1xf32>
    %457 = arith.addf %233, %456 : vector<1x1xf32>
    %458 = arith.subf %298, %352 : vector<1x256xf32>
    %459 = arith.mulf %458, %458 : vector<1x256xf32>
    %460 = vector.shape_cast %459 : vector<1x256xf32> to vector<1x1x256xf32>
    %cst_114 = arith.constant dense<0.000000e+00> : vector<1xf32>
    %461 = vector.multi_reduction <add>, %460, %cst_114 [1, 2] : vector<1x1x256xf32> to vector<1xf32>
    %462 = vector.shape_cast %461 : vector<1xf32> to vector<1x1x1xf32>
    %463 = vector.extract %462[0, 0, 0] : f32 from vector<1x1x1xf32>
    %464 = vector.broadcast %463 : f32 to vector<1x1xf32>
    %465 = arith.addf %241, %464 : vector<1x1xf32>
    %cst_115 = arith.constant 9.000000e+00 : f32
    %466 = vector.broadcast %cst_115 : f32 to vector<1x1xf32>
    %467 = arith.mulf %386, %466 : vector<1x1xf32>
    %cst_116 = arith.constant 1.000000e+00 : f32
    %468 = vector.broadcast %cst_116 : f32 to vector<1x1xf32>
    %469 = arith.mulf %467, %468 : vector<1x1xf32>
    %470 = arith.addf %427, %457 : vector<1x1xf32>
    %cst_117 = arith.constant 5.000000e-01 : f32
    %471 = vector.broadcast %cst_117 : f32 to vector<1x1xf32>
    %472 = arith.mulf %470, %471 : vector<1x1xf32>
    %cst_118 = arith.constant 9.000000e+00 : f32
    %473 = vector.broadcast %cst_118 : f32 to vector<1x1xf32>
    %474 = arith.mulf %472, %473 : vector<1x1xf32>
    %cst_119 = arith.constant 1.600000e+01 : f32
    %475 = vector.broadcast %cst_119 : f32 to vector<1x1xf32>
    %476 = arith.divf %474, %475 : vector<1x1xf32>
    %cst_120 = arith.constant 1.95312503E-4 : f32
    %477 = vector.broadcast %cst_120 : f32 to vector<1x1xf32>
    %478 = arith.mulf %465, %477 : vector<1x1xf32>
    %479 = arith.addf %469, %476 : vector<1x1xf32>
    %cst_121 = arith.constant 5.000000e-01 : f32
    %480 = vector.broadcast %cst_121 : f32 to vector<1x1xf32>
    %481 = arith.mulf %479, %480 : vector<1x1xf32>
    %482 = arith.addf %481, %478 : vector<1x1xf32>
    %c16 = arith.constant 16 : index
    %c0_122 = arith.constant 0 : index
    %483 = vector.load %arg4[%c16, %c0_122] : memref<24x128xf32, #tpu.memory_space<vmem>>, vector<1x1xf32>
    tpu.vector_store %arg4[%c16, %c0_122], %482 {strides = array<i32>} : memref<24x128xf32, #tpu.memory_space<vmem>>, vector<1x1xf32>,
    return
  }
  func.func @transform_0(%arg0: i32) -> (i32, i32) {
    %c0_i32 = arith.constant 0 : i32
    %c0_i32_0 = arith.constant 0 : i32
    %c0_i32_1 = arith.constant 0 : i32
    return %c0_i32, %c0_i32_0 : i32, i32
  }
  func.func @transform_1(%arg0: i32) -> (i32, i32) {
    %c0_i32 = arith.constant 0 : i32
    %c0_i32_0 = arith.constant 0 : i32
    %c0_i32_1 = arith.constant 0 : i32
    return %c0_i32, %c0_i32_0 : i32, i32
  }
  func.func @transform_2(%arg0: i32) -> (i32, i32, i32) {
    %c0_i32 = arith.constant 0 : i32
    %c0_i32_0 = arith.constant 0 : i32
    %c0_i32_1 = arith.constant 0 : i32
    %c0_i32_2 = arith.constant 0 : i32
    return %c0_i32, %c0_i32_0, %c0_i32_1 : i32, i32, i32
  }
  func.func @transform_3(%arg0: i32) -> (i32, i32) {
    %c0_i32 = arith.constant 0 : i32
    %c0_i32_0 = arith.constant 0 : i32
    %c0_i32_1 = arith.constant 0 : i32
    return %c0_i32, %c0_i32_0 : i32, i32
  }
}

</mosaic_0001>

<llo_original>
// kernel: tpu_custom_call.1
$region0: #{tpu_custom_call.1}
  #allocation0 [shape = 'u32[]', space=smem, size = 0x4, offset = 0x4, fixed_abs, tag = 'smem constant byte address 0x4 - core index']
  #allocation1 [shape = 'u32[144,128]{1,0:T(1,128)}', space=vmem, size = 0x12000, scoped, tag = 'internal scratch']
  %s0 = inlined_call_operand.vmem [shape: f32[40,512], index: 0, kind: input, shape index: {}]
  %s1 = inlined_call_operand.vmem [shape: f32[64,40], index: 1, kind: input, shape index: {}]
  %s2 = inlined_call_operand.vmem [shape: f32[2,64,33], index: 2, kind: input, shape index: {}]
  %s3 = inlined_call_operand.hbm [shape: f32[24,128], index: 3, kind: output, shape index: {}]
  %s4 = sld [smem:[#allocation0]]
  $region22: #{tpu_custom_call.1} parent=0
    _
  %s6 = ssub.s32 1, %s4
  %s7 = scalar_select 0, %s6, %s4
  $region1: #{tpu_custom_call.1} parent=0
    #allocation2 [shape = 'u8[12288]{0}', space=vmem, size = 0x3000, scoped, tag = 'output window, operand 0, single buffered']
    #allocation3 [shape = 's32[1]{0}', space=sflag, size = 0x4, scoped, tag = 'scoped memory for tpu_custom_call.1']
    %8 = vsyncpa [#allocation3], 0
    // Predicated region
    $region2: #{tpu_custom_call.1} parent=1 // pred_check
      _
    $region3: #{tpu_custom_call.1} parent=1 // pred_check_branch
      %10 = sbr.rel (0) target = $region5
    $region4: #{tpu_custom_call.1} parent=1 // pred_region
      _
    $region5: #{tpu_custom_call.1} parent=1 // pred_fallthru
      _
    // Predicated region
    $region6: #{tpu_custom_call.1} parent=1 // pred_check
      _
    $region7: #{tpu_custom_call.1} parent=1 // pred_check_branch
      %12 = sbr.rel (0) target = $region9
    $region8: #{tpu_custom_call.1} parent=1 // pred_region
      _
    $region9: #{tpu_custom_call.1} parent=1 // pred_fallthru
      _
    // Predicated region
    $region10: #{tpu_custom_call.1} parent=1 // pred_check
      _
    $region11: #{tpu_custom_call.1} parent=1 // pred_check_branch
      %14 = sbr.rel (0) target = $region13
    $region12: #{tpu_custom_call.1} parent=1 // pred_region
      _
    $region13: #{tpu_custom_call.1} parent=1 // pred_fallthru
      _
    %15 = vst [vmem:[#allocation2] sm:$0xff] 0.0
    %16 = vst [vmem:[#allocation2 + $0x8] sm:$0xff] 0.0
    %17 = vst [vmem:[#allocation2 + $0x10] sm:$0xff] 0.0
    %v18 = vld [vmem:[%s1] sm:$0xff]
    %v19 = vld [vmem:[%s1 + $0x8] sm:$0xff]
    %v20 = vld [vmem:[%s1 + $0x10] sm:$0xff]
    %v21 = vld [vmem:[%s1 + $0x18] sm:$0xff]
    %v22 = vld [vmem:[%s1 + $0x20] sm:$0xff]
    %v23 = vld [vmem:[%s1 + $0x28] sm:$0xff]
    %v24 = vld [vmem:[%s1 + $0x30] sm:$0xff]
    %v25 = vld [vmem:[%s1 + $0x38] sm:$0xff]
    %v26 = vld [vmem:[%s0] sm:$0xff]
    %v27 = vld [vmem:[%s0 + $0x8] sm:$0xff]
    %v28 = vld [vmem:[%s0 + $0x10] sm:$0xff]
    %v29 = vld [vmem:[%s0 + $0x18] sm:$0xff]
    %v30 = vld [vmem:[%s0 + $0x20] sm:$0xff]
    %v31 = vld [vmem:[%s0 + $0x28] sm:$0xff]
    %v32 = vld [vmem:[%s0 + $0x30] sm:$0xff]
    %v33 = vld [vmem:[%s0 + $0x38] sm:$0xff]
    %v34 = vld [vmem:[%s0 + $0x40] sm:$0xff]
    %v35 = vld [vmem:[%s0 + $0x48] sm:$0xff]
    %v36 = vld [vmem:[%s0 + $0x50] sm:$0xff]
    %v37 = vld [vmem:[%s0 + $0x58] sm:$0xff]
    %v38 = vld [vmem:[%s0 + $0x60] sm:$0xff]
    %v39 = vld [vmem:[%s0 + $0x68] sm:$0xff]
    %v40 = vld [vmem:[%s0 + $0x70] sm:$0xff]
    %v41 = vld [vmem:[%s0 + $0x78] sm:$0xff]
    %v42 = vld [vmem:[%s0 + $0x80] sm:$0xff]
    %v43 = vld [vmem:[%s0 + $0x88] sm:$0xff]
    %v44 = vld [vmem:[%s0 + $0x90] sm:$0xff]
    %v45 = vld [vmem:[%s0 + $0x98] sm:$0xff]
    %vm46 = vcmask 326656
    %v48 = vsel %vm46, %v18, 0
    %v51 = vsel %vm46, %v19, 0
    %v54 = vsel %vm46, %v20, 0
    %v57 = vsel %vm46, %v21, 0
    %v60 = vsel %vm46, %v22, 0
    %v63 = vsel %vm46, %v23, 0
    %v66 = vsel %vm46, %v24, 0
    %v69 = vsel %vm46, %v25, 0
    %71 = vmatprep.subr.mxu0 %v27
    %72 = vmatpush1.msra.mxu0 %v26
    %73 = vmatprep.subr.mxu0 %v31
    %74 = vmatpush1.msra.mxu0 %v30
    %75 = vmatprep.subr.mxu0 %v35
    %76 = vmatpush1.msra.mxu0 %v34
    %77 = vmatprep.subr.mxu0 %v39
    %78 = vmatpush1.msra.mxu0 %v38
    %79 = vmatprep.subr.mxu0 %v43
    %80 = vmatpush1.msra.mxu0 %v42
    %81 = vmatprep.subr.mxu0 0.0
    %82 = vmatpush1.msra.mxu0 0.0
    %83 = vmatprep.subr.mxu0 0.0
    %84 = vmatpush1.msra.mxu0 0.0
    %85 = vmatprep.subr.mxu0 0.0
    %86 = vmatpush1.msra.mxu0 0.0
    %87 = vmatprep.subr.mxu0 0.0
    %88 = vmatpush1.msra.mxu0 0.0
    %89 = vmatprep.subr.mxu0 0.0
    %90 = vmatpush1.msra.mxu0 0.0
    %91 = vmatprep.subr.mxu0 0.0
    %92 = vmatpush1.msra.mxu0 0.0
    %93 = vmatprep.subr.mxu0 0.0
    %94 = vmatpush1.msra.mxu0 0.0
    %95 = vmatprep.subr.mxu0 0.0
    %96 = vmatpush1.msra.mxu0 0.0
    %97 = vmatprep.subr.mxu0 0.0
    %98 = vmatpush1.msra.mxu0 0.0
    %99 = vmatprep.subr.mxu0 0.0
    %100 = vmatpush1.msra.mxu0 0.0
    %101 = vmatprep.subr.mxu0 0.0
    %102 = vmatpush1.msra.mxu0 0.0
    %103 = vmatprep.subr.mxu0 0.0
    %104 = vmatpush1.msra.mxu0 0.0
    %105 = vmatprep.subr.mxu0 0.0
    %106 = vmatpush1.msra.mxu0 0.0
    %107 = vmatprep.subr.mxu0 0.0
    %108 = vmatpush1.msra.mxu0 0.0
    %109 = vmatprep.subr.mxu0 0.0
    %110 = vmatpush1.msra.mxu0 0.0
    %111 = vmatprep.subr.mxu0 0.0
    %112 = vmatpush1.msra.mxu0 0.0
    %113 = vmatprep.subr.mxu0 0.0
    %114 = vmatpush1.msra.mxu0 0.0
    %115 = vmatprep.subr.mxu0 0.0
    %116 = vmatpush1.msra.mxu0 0.0
    %117 = vmatprep.subr.mxu0 0.0
    %118 = vmatpush1.msra.mxu0 0.0
    %119 = vmatprep.subr.mxu0 0.0
    %120 = vmatpush1.msra.mxu0 0.0
    %121 = vmatprep.subr.mxu0 0.0
    %122 = vmatpush1.msra.mxu0 0.0
    %123 = vmatprep.subr.mxu0 0.0
    %124 = vmatpush1.msra.mxu0 0.0
    %125 = vmatprep.subr.mxu0 0.0
    %126 = vmatpush1.msra.mxu0 0.0
    %127 = vmatprep.subr.mxu0 0.0
    %128 = vmatpush1.msra.mxu0 0.0
    %129 = vmatprep.subr.mxu0 0.0
    %130 = vmatpush1.msra.mxu0 0.0
    %131 = vmatprep.subr.mxu0 0.0
    %132 = vmatpush1.msra.mxu0 0.0
    %133 = vmatprep.subr.mxu0 0.0
    %134 = vmatpush1.msra.mxu0 0.0
    %135 = vmatprep.mubr.f32.mxu0 0.0
    %136 = vmatmul.mubr.f32.gmra.mrb[0].mxu0 %v48
    %v137 = vpop.f32.mrb[0].mxu0
    %v138 = vadd.f32 0.0, %v137
    %v139 = vpop.f32.mrb[0].mxu0
    %v140 = vadd.f32 0.0, %v139
    %141 = vmatprep.mubr.f32.mxu0 0.0
    %142 = vmatmul.mubr.f32.gmra.mrb[0].mxu0 %v51
    %v143 = vpop.f32.mrb[0].mxu0
    %v144 = vadd.f32 0.0, %v143
    %v145 = vpop.f32.mrb[0].mxu0
    %v146 = vadd.f32 0.0, %v145
    %147 = vmatprep.mubr.f32.mxu0 0.0
    %148 = vmatmul.mubr.f32.gmra.mrb[0].mxu0 %v54
    %v149 = vpop.f32.mrb[0].mxu0
    %v150 = vadd.f32 0.0, %v149
    %v151 = vpop.f32.mrb[0].mxu0
    %v152 = vadd.f32 0.0, %v151
    %153 = vmatprep.mubr.f32.mxu0 0.0
    %154 = vmatmul.mubr.f32.gmra.mrb[0].mxu0 %v57
    %v155 = vpop.f32.mrb[0].mxu0
    %v156 = vadd.f32 0.0, %v155
    %v157 = vpop.f32.mrb[0].mxu0
    %v158 = vadd.f32 0.0, %v157
    %159 = vmatprep.mubr.f32.mxu0 0.0
    %160 = vmatmul.mubr.f32.gmra.mrb[0].mxu0 %v60
    %v161 = vpop.f32.mrb[0].mxu0
    %v162 = vadd.f32 0.0, %v161
    %v163 = vpop.f32.mrb[0].mxu0
    %v164 = vadd.f32 0.0, %v163
    %165 = vmatprep.mubr.f32.mxu0 0.0
    %166 = vmatmul.mubr.f32.gmra.mrb[0].mxu0 %v63
    %v167 = vpop.f32.mrb[0].mxu0
    %v168 = vadd.f32 0.0, %v167
    %v169 = vpop.f32.mrb[0].mxu0
    %v170 = vadd.f32 0.0, %v169
    %171 = vmatprep.mubr.f32.mxu0 0.0
    %172 = vmatmul.mubr.f32.gmra.mrb[0].mxu0 %v66
    %v173 = vpop.f32.mrb[0].mxu0
    %v174 = vadd.f32 0.0, %v173
    %v175 = vpop.f32.mrb[0].mxu0
    %v176 = vadd.f32 0.0, %v175
    %177 = vmatprep.mubr.f32.mxu0 0.0
    %178 = vmatmul.mubr.f32.gmra.mrb[0].mxu0 %v69
    %v179 = vpop.f32.mrb[0].mxu0
    %v180 = vadd.f32 0.0, %v179
    %v181 = vpop.f32.mrb[0].mxu0
    %v182 = vadd.f32 0.0, %v181
    %183 = vdwg.mxu0
    %184 = vmatprep.subr.mxu0 %v29
    %185 = vmatpush1.msra.mxu0 %v28
    %186 = vmatprep.subr.mxu0 %v33
    %187 = vmatpush1.msra.mxu0 %v32
    %188 = vmatprep.subr.mxu0 %v37
    %189 = vmatpush1.msra.mxu0 %v36
    %190 = vmatprep.subr.mxu0 %v41
    %191 = vmatpush1.msra.mxu0 %v40
    %192 = vmatprep.subr.mxu0 %v45
    %193 = vmatpush1.msra.mxu0 %v44
    %194 = vmatprep.subr.mxu0 0.0
    %195 = vmatpush1.msra.mxu0 0.0
    %196 = vmatprep.subr.mxu0 0.0
    %197 = vmatpush1.msra.mxu0 0.0
    %198 = vmatprep.subr.mxu0 0.0
    %199 = vmatpush1.msra.mxu0 0.0
    %200 = vmatprep.subr.mxu0 0.0
    %201 = vmatpush1.msra.mxu0 0.0
    %202 = vmatprep.subr.mxu0 0.0
    %203 = vmatpush1.msra.mxu0 0.0
    %204 = vmatprep.subr.mxu0 0.0
    %205 = vmatpush1.msra.mxu0 0.0
    %206 = vmatprep.subr.mxu0 0.0
    %207 = vmatpush1.msra.mxu0 0.0
    %208 = vmatprep.subr.mxu0 0.0
    %209 = vmatpush1.msra.mxu0 0.0
    %210 = vmatprep.subr.mxu0 0.0
    %211 = vmatpush1.msra.mxu0 0.0
    %212 = vmatprep.subr.mxu0 0.0
    %213 = vmatpush1.msra.mxu0 0.0
    %214 = vmatprep.subr.mxu0 0.0
    %215 = vmatpush1.msra.mxu0 0.0
    %216 = vmatprep.subr.mxu0 0.0
    %217 = vmatpush1.msra.mxu0 0.0
    %218 = vmatprep.subr.mxu0 0.0
    %219 = vmatpush1.msra.mxu0 0.0
    %220 = vmatprep.subr.mxu0 0.0
    %221 = vmatpush1.msra.mxu0 0.0
    %222 = vmatprep.subr.mxu0 0.0
    %223 = vmatpush1.msra.mxu0 0.0
    %224 = vmatprep.subr.mxu0 0.0
    %225 = vmatpush1.msra.mxu0 0.0
    %226 = vmatprep.subr.mxu0 0.0
    %227 = vmatpush1.msra.mxu0 0.0
    %228 = vmatprep.subr.mxu0 0.0
    %229 = vmatpush1.msra.mxu0 0.0
    %230 = vmatprep.subr.mxu0 0.0
    %231 = vmatpush1.msra.mxu0 0.0
    %232 = vmatprep.subr.mxu0 0.0
    %233 = vmatpush1.msra.mxu0 0.0
    %234 = vmatprep.subr.mxu0 0.0
    %235 = vmatpush1.msra.mxu0 0.0
    %236 = vmatprep.subr.mxu0 0.0
    %237 = vmatpush1.msra.mxu0 0.0
    %238 = vmatprep.subr.mxu0 0.0
    %239 = vmatpush1.msra.mxu0 0.0
    %240 = vmatprep.subr.mxu0 0.0
    %241 = vmatpush1.msra.mxu0 0.0
    %242 = vmatprep.subr.mxu0 0.0
    %243 = vmatpush1.msra.mxu0 0.0
    %244 = vmatprep.subr.mxu0 0.0
    %245 = vmatpush1.msra.mxu0 0.0
    %246 = vmatprep.subr.mxu0 0.0
    %247 = vmatpush1.msra.mxu0 0.0
    %248 = vmatprep.mubr.f32.mxu0 0.0
    %249 = vmatmul.mubr.f32.gmra.mrb[0].mxu0 %v48
    %v250 = vpop.f32.mrb[0].mxu0
    %v251 = vadd.f32 0.0, %v250
    %v252 = vpop.f32.mrb[0].mxu0
    %v253 = vadd.f32 0.0, %v252
    %254 = vmatprep.mubr.f32.mxu0 0.0
    %255 = vmatmul.mubr.f32.gmra.mrb[0].mxu0 %v51
    %v256 = vpop.f32.mrb[0].mxu0
    %v257 = vadd.f32 0.0, %v256
    %v258 = vpop.f32.mrb[0].mxu0
    %v259 = vadd.f32 0.0, %v258
    %260 = vmatprep.mubr.f32.mxu0 0.0
    %261 = vmatmul.mubr.f32.gmra.mrb[0].mxu0 %v54
    %v262 = vpop.f32.mrb[0].mxu0
    %v263 = vadd.f32 0.0, %v262
    %v264 = vpop.f32.mrb[0].mxu0
    %v265 = vadd.f32 0.0, %v264
    %266 = vmatprep.mubr.f32.mxu0 0.0
    %267 = vmatmul.mubr.f32.gmra.mrb[0].mxu0 %v57
    %v268 = vpop.f32.mrb[0].mxu0
    %v269 = vadd.f32 0.0, %v268
    %v270 = vpop.f32.mrb[0].mxu0
    %v271 = vadd.f32 0.0, %v270
    %272 = vmatprep.mubr.f32.mxu0 0.0
    %273 = vmatmul.mubr.f32.gmra.mrb[0].mxu0 %v60
    %v274 = vpop.f32.mrb[0].mxu0
    %v275 = vadd.f32 0.0, %v274
    %v276 = vpop.f32.mrb[0].mxu0
    %v277 = vadd.f32 0.0, %v276
    %278 = vmatprep.mubr.f32.mxu0 0.0
    %279 = vmatmul.mubr.f32.gmra.mrb[0].mxu0 %v63
    %v280 = vpop.f32.mrb[0].mxu0
    %v281 = vadd.f32 0.0, %v280
    %v282 = vpop.f32.mrb[0].mxu0
    %v283 = vadd.f32 0.0, %v282
    %284 = vmatprep.mubr.f32.mxu0 0.0
    %285 = vmatmul.mubr.f32.gmra.mrb[0].mxu0 %v66
    %v286 = vpop.f32.mrb[0].mxu0
    %v287 = vadd.f32 0.0, %v286
    %v288 = vpop.f32.mrb[0].mxu0
    %v289 = vadd.f32 0.0, %v288
    %290 = vmatprep.mubr.f32.mxu0 0.0
    %291 = vmatmul.mubr.f32.gmra.mrb[0].mxu0 %v69
    %v292 = vpop.f32.mrb[0].mxu0
    %v293 = vadd.f32 0.0, %v292
    %v294 = vpop.f32.mrb[0].mxu0
    %v295 = vadd.f32 0.0, %v294
    %296 = vdwg.mxu0
    %v297 = vmax.f32 %v138, 0.0
    %v298 = vmax.f32 %v140, 0.0
    %v299 = vmax.f32 %v251, 0.0
    %v300 = vmax.f32 %v253, 0.0
    %v301 = vmax.f32 %v144, 0.0
    %v302 = vmax.f32 %v146, 0.0
    %v303 = vmax.f32 %v257, 0.0
    %v304 = vmax.f32 %v259, 0.0
    %v305 = vmax.f32 %v150, 0.0
    %v306 = vmax.f32 %v152, 0.0
    %v307 = vmax.f32 %v263, 0.0
    %v308 = vmax.f32 %v265, 0.0
    %v309 = vmax.f32 %v156, 0.0
    %v310 = vmax.f32 %v158, 0.0
    %v311 = vmax.f32 %v269, 0.0
    %v312 = vmax.f32 %v271, 0.0
    %v313 = vmax.f32 %v162, 0.0
    %v314 = vmax.f32 %v164, 0.0
    %v315 = vmax.f32 %v275, 0.0
    %v316 = vmax.f32 %v277, 0.0
    %v317 = vmax.f32 %v168, 0.0
    %v318 = vmax.f32 %v170, 0.0
    %v319 = vmax.f32 %v281, 0.0
    %v320 = vmax.f32 %v283, 0.0
    %v321 = vmax.f32 %v174, 0.0
    %v322 = vmax.f32 %v176, 0.0
    %v323 = vmax.f32 %v287, 0.0
    %v324 = vmax.f32 %v289, 0.0
    %v325 = vmax.f32 %v180, 0.0
    %v326 = vmax.f32 %v182, 0.0
    %v327 = vmax.f32 %v293, 0.0
    %v328 = vmax.f32 %v295, 0.0
    %v329 = vld [vmem:[%s2] sm:$0xff]
    %v330 = vld [vmem:[%s2 + $0x8] sm:$0xff]
    %v331 = vld [vmem:[%s2 + $0x10] sm:$0xff]
    %v332 = vld [vmem:[%s2 + $0x18] sm:$0xff]
    %v333 = vld [vmem:[%s2 + $0x20] sm:$0xff]
    %v334 = vld [vmem:[%s2 + $0x28] sm:$0xff]
    %v335 = vld [vmem:[%s2 + $0x30] sm:$0xff]
    %v336 = vld [vmem:[%s2 + $0x38] sm:$0xff]
    %s337 = scalar_lea.vmem %s2, 64
    %v338 = vld [vmem:[%s337] sm:$0xff]
    %v339 = vld [vmem:[%s337 + $0x8] sm:$0xff]
    %v340 = vld [vmem:[%s337 + $0x10] sm:$0xff]
    %v341 = vld [vmem:[%s337 + $0x18] sm:$0xff]
    %v342 = vld [vmem:[%s337 + $0x20] sm:$0xff]
    %v343 = vld [vmem:[%s337 + $0x28] sm:$0xff]
    %v344 = vld [vmem:[%s337 + $0x30] sm:$0xff]
    %v345 = vld [vmem:[%s337 + $0x38] sm:$0xff]
    %v346 = vmax.f32 %v297, %v298
    %347 = vmax.xlane.f32.xlu0 %v346
    %v348 = vpop.xlane.xlu0 %347
    %v349 = vmax.f32 %v301, %v302
    %350 = vmax.xlane.f32.xlu0 %v349
    %v351 = vpop.xlane.xlu0 %350
    %v352 = vmax.f32 %v305, %v306
    %353 = vmax.xlane.f32.xlu0 %v352
    %v354 = vpop.xlane.xlu0 %353
    %v355 = vmax.f32 %v309, %v310
    %356 = vmax.xlane.f32.xlu0 %v355
    %v357 = vpop.xlane.xlu0 %356
    %v358 = vmax.f32 %v313, %v314
    %359 = vmax.xlane.f32.xlu0 %v358
    %v360 = vpop.xlane.xlu0 %359
    %v361 = vmax.f32 %v317, %v318
    %362 = vmax.xlane.f32.xlu0 %v361
    %v363 = vpop.xlane.xlu0 %362
    %v364 = vmax.f32 %v321, %v322
    %365 = vmax.xlane.f32.xlu0 %v364
    %v366 = vpop.xlane.xlu0 %365
    %v367 = vmax.f32 %v325, %v326
    %368 = vmax.xlane.f32.xlu0 %v367
    %v369 = vpop.xlane.xlu0 %368
    %374 = vrot.lane.b32.xlu0 %v333, 96
    %v375 = vpop.permute.xlu0 %374
    %376 = vrot.lane.b32.xlu0 %v334, 96
    %v377 = vpop.permute.xlu0 %376
    %378 = vrot.lane.b32.xlu0 %v335, 96
    %v379 = vpop.permute.xlu0 %378
    %380 = vrot.lane.b32.xlu0 %v336, 96
    %v381 = vpop.permute.xlu0 %380
    %vm386 = vcmask 261120
    %v387 = vsel %vm386, %v333, 0
    %v389 = vsel %vm386, %v334, 0
    %v391 = vsel %vm386, %v335, 0
    %v393 = vsel %vm386, %v336, 0
    %395 = vmatprep.subr.mxu0 0.0
    %396 = vmatpush1.msra.mxu0 %v348
    %397 = vmatprep.subr.mxu0 0.0
    %398 = vmatpush1.msra.mxu0 %v351
    %399 = vmatprep.subr.mxu0 0.0
    %400 = vmatpush1.msra.mxu0 %v354
    %401 = vmatprep.subr.mxu0 0.0
    %402 = vmatpush1.msra.mxu0 %v357
    %403 = vmatprep.subr.mxu0 0.0
    %404 = vmatpush1.msra.mxu0 0.0
    %405 = vmatprep.subr.mxu0 0.0
    %406 = vmatpush1.msra.mxu0 0.0
    %407 = vmatprep.subr.mxu0 0.0
    %408 = vmatpush1.msra.mxu0 0.0
    %409 = vmatprep.subr.mxu0 0.0
    %410 = vmatpush1.msra.mxu0 0.0
    %411 = vmatprep.subr.mxu0 0.0
    %412 = vmatpush1.msra.mxu0 0.0
    %413 = vmatprep.subr.mxu0 0.0
    %414 = vmatpush1.msra.mxu0 0.0
    %415 = vmatprep.subr.mxu0 0.0
    %416 = vmatpush1.msra.mxu0 0.0
    %417 = vmatprep.subr.mxu0 0.0
    %418 = vmatpush1.msra.mxu0 0.0
    %419 = vmatprep.subr.mxu0 0.0
    %420 = vmatpush1.msra.mxu0 0.0
    %421 = vmatprep.subr.mxu0 0.0
    %422 = vmatpush1.msra.mxu0 0.0
    %423 = vmatprep.subr.mxu0 0.0
    %424 = vmatpush1.msra.mxu0 0.0
    %425 = vmatprep.subr.mxu0 0.0
    %426 = vmatpush1.msra.mxu0 0.0
    %427 = vmatprep.subr.mxu0 0.0
    %428 = vmatpush1.msra.mxu0 0.0
    %429 = vmatprep.subr.mxu0 0.0
    %430 = vmatpush1.msra.mxu0 0.0
    %431 = vmatprep.subr.mxu0 0.0
    %432 = vmatpush1.msra.mxu0 0.0
    %433 = vmatprep.subr.mxu0 0.0
    %434 = vmatpush1.msra.mxu0 0.0
    %435 = vmatprep.subr.mxu0 0.0
    %436 = vmatpush1.msra.mxu0 0.0
    %437 = vmatprep.subr.mxu0 0.0
    %438 = vmatpush1.msra.mxu0 0.0
    %439 = vmatprep.subr.mxu0 0.0
    %440 = vmatpush1.msra.mxu0 0.0
    %441 = vmatprep.subr.mxu0 0.0
    %442 = vmatpush1.msra.mxu0 0.0
    %443 = vmatprep.subr.mxu0 0.0
    %444 = vmatpush1.msra.mxu0 0.0
    %445 = vmatprep.subr.mxu0 0.0
    %446 = vmatpush1.msra.mxu0 0.0
    %447 = vmatprep.subr.mxu0 0.0
    %448 = vmatpush1.msra.mxu0 0.0
    %449 = vmatprep.subr.mxu0 0.0
    %450 = vmatpush1.msra.mxu0 0.0
    %451 = vmatprep.subr.mxu0 0.0
    %452 = vmatpush1.msra.mxu0 0.0
    %453 = vmatprep.subr.mxu0 0.0
    %454 = vmatpush1.msra.mxu0 0.0
    %455 = vmatprep.subr.mxu0 0.0
    %456 = vmatpush1.msra.mxu0 0.0
    %457 = vmatprep.subr.mxu0 0.0
    %458 = vmatpush1.msra.mxu0 0.0
    %459 = vmatprep.mubr.f32.mxu0 0.0
    %460 = vmatmul.mubr.f32.gmra.mrb[0].mxu0 %v387
    %v461 = vpop.f32.mrb[0].mxu0
    %v462 = vadd.f32 %v375, %v461
    %v463 = vpop.f32.mrb[0].mxu0
    %464 = vmatprep.mubr.f32.mxu0 0.0
    %465 = vmatmul.mubr.f32.gmra.mrb[0].mxu0 %v389
    %v466 = vpop.f32.mrb[0].mxu0
    %v467 = vadd.f32 %v377, %v466
    %v468 = vpop.f32.mrb[0].mxu0
    %469 = vmatprep.mubr.f32.mxu0 0.0
    %470 = vmatmul.mubr.f32.gmra.mrb[0].mxu0 %v391
    %v471 = vpop.f32.mrb[0].mxu0
    %v472 = vadd.f32 %v379, %v471
    %v473 = vpop.f32.mrb[0].mxu0
    %474 = vmatprep.mubr.f32.mxu0 0.0
    %475 = vmatmul.mubr.f32.gmra.mrb[0].mxu0 %v393
    %v476 = vpop.f32.mrb[0].mxu0
    %v477 = vadd.f32 %v381, %v476
    %v478 = vpop.f32.mrb[0].mxu0
    %479 = vdwg.mxu0
    %vm480 = vcmask 7168
    %v481 = vsel %vm480, %v462, -inf
    %v482 = vsel %vm480, %v467, -inf
    %v483 = vmax.f32 %v481, %v482
    %v484 = vrot.slane %v483, 4
    %v485 = vmax.f32 %v483, %v484
    %v486 = vrot.slane %v485, 2
    %v487 = vmax.f32 %v485, %v486
    %v488 = vrot.slane %v487, 1
    %v489 = vmax.f32 %v487, %v488
    %v490 = vsub.f32 %v462, %v489
    %v491 = vsub.f32 %v467, %v489
    %v492 = vmul.f32 %v490, 1.442695
    %v493 = vpow.pop %v492
    %v494 = vmul.f32 %v491, 1.442695
    %v495 = vpow.pop %v494
    %v496 = vsel %vm480, %v493, 0.0
    %v497 = vsel %vm480, %v495, 0.0
    %v498 = vadd.f32 %v496, %v497
    %v499 = vrot.slane %v498, 4
    %v500 = vadd.f32 %v498, %v499
    %v501 = vrot.slane %v500, 2
    %v502 = vadd.f32 %v500, %v501
    %v503 = vrot.slane %v502, 1
    %v504 = vadd.f32 %v502, %v503
    %v505 = vlog2.pop %v504
    %v506 = vmul.f32 %v505, 0.6931472
    %v507 = vsub.f32 %v490, %v506
    %v508 = vsub.f32 %v491, %v506
    %v509 = vsel %vm480, %v472, -inf
    %v510 = vsel %vm480, %v477, -inf
    %v511 = vmax.f32 %v509, %v510
    %v512 = vrot.slane %v511, 4
    %v513 = vmax.f32 %v511, %v512
    %v514 = vrot.slane %v513, 2
    %v515 = vmax.f32 %v513, %v514
    %v516 = vrot.slane %v515, 1
    %v517 = vmax.f32 %v515, %v516
    %v518 = vsub.f32 %v472, %v517
    %v519 = vsub.f32 %v477, %v517
    %v520 = vmul.f32 %v518, 1.442695
    %v521 = vpow.pop %v520
    %v522 = vmul.f32 %v519, 1.442695
    %v523 = vpow.pop %v522
    %v524 = vsel %vm480, %v521, 0.0
    %v525 = vsel %vm480, %v523, 0.0
    %v526 = vadd.f32 %v524, %v525
    %v527 = vrot.slane %v526, 4
    %v528 = vadd.f32 %v526, %v527
    %v529 = vrot.slane %v528, 2
    %v530 = vadd.f32 %v528, %v529
    %v531 = vrot.slane %v530, 1
    %v532 = vadd.f32 %v530, %v531
    %v533 = vlog2.pop %v532
    %v534 = vmul.f32 %v533, 0.6931472
    %v535 = vsub.f32 %v518, %v534
    %v536 = vsub.f32 %v519, %v534
    %v537 = vmul.f32 %v507, 1.442695
    %v538 = vpow.pop %v537
    %v539 = vmul.f32 %v508, 1.442695
    %v540 = vpow.pop %v539
    %v541 = vmul.f32 %v535, 1.442695
    %v542 = vpow.pop %v541
    %v543 = vmul.f32 %v536, 1.442695
    %v544 = vpow.pop %v543
    %v545 = vsub.f32 %v535, %v507
    %v546 = vsub.f32 %v536, %v508
    %v547 = vmul.f32 %v542, %v545
    %v548 = vmul.f32 %v544, %v546
    %v549 = vsel %vm480, %v547, 0.0
    %v550 = vsel %vm480, %v548, 0.0
    %v551 = vadd.f32 %v549, %v550
    %v552 = vrot.slane %v551, 4
    %v553 = vadd.f32 %v551, %v552
    %v554 = vrot.slane %v553, 2
    %v555 = vadd.f32 %v553, %v554
    %v556 = vrot.slane %v555, 1
    %v557 = vadd.f32 %v555, %v556
    %v558 = vsub.f32 %v538, %v542
    %v559 = vsub.f32 %v540, %v544
    %v560 = vsub.f32 %v545, %v557
    %v561 = vsub.f32 %v546, %v557
    %v562 = vmul.f32 %v542, %v560
    %v563 = vmul.f32 %v544, %v561
    %v565 = vsel %vm386, %v329, 0
    %v568 = vsel %vm386, %v330, 0
    %v571 = vsel %vm386, %v331, 0
    %v574 = vsel %vm386, %v332, 0
    %576 = vmatprep.subr.mxu0 0.0
    %577 = vmatpush1.msra.mxu0 %v558
    %578 = vmatprep.subr.mxu0 0.0
    %579 = vmatpush1.msra.mxu0 %v559
    %580 = vmatprep.subr.mxu0 0.0
    %581 = vmatpush1.msra.mxu0 %v562
    %582 = vmatprep.subr.mxu0 0.0
    %583 = vmatpush1.msra.mxu0 %v563
    %584 = vmatprep.subr.mxu0 0.0
    %585 = vmatpush1.msra.mxu0 0.0
    %586 = vmatprep.subr.mxu0 0.0
    %587 = vmatpush1.msra.mxu0 0.0
    %588 = vmatprep.subr.mxu0 0.0
    %589 = vmatpush1.msra.mxu0 0.0
    %590 = vmatprep.subr.mxu0 0.0
    %591 = vmatpush1.msra.mxu0 0.0
    %592 = vmatprep.subr.mxu0 0.0
    %593 = vmatpush1.msra.mxu0 0.0
    %594 = vmatprep.subr.mxu0 0.0
    %595 = vmatpush1.msra.mxu0 0.0
    %596 = vmatprep.subr.mxu0 0.0
    %597 = vmatpush1.msra.mxu0 0.0
    %598 = vmatprep.subr.mxu0 0.0
    %599 = vmatpush1.msra.mxu0 0.0
    %600 = vmatprep.subr.mxu0 0.0
    %601 = vmatpush1.msra.mxu0 0.0
    %602 = vmatprep.subr.mxu0 0.0
    %603 = vmatpush1.msra.mxu0 0.0
    %604 = vmatprep.subr.mxu0 0.0
    %605 = vmatpush1.msra.mxu0 0.0
    %606 = vmatprep.subr.mxu0 0.0
    %607 = vmatpush1.msra.mxu0 0.0
    %608 = vmatprep.subr.mxu0 0.0
    %609 = vmatpush1.msra.mxu0 0.0
    %610 = vmatprep.subr.mxu0 0.0
    %611 = vmatpush1.msra.mxu0 0.0
    %612 = vmatprep.subr.mxu0 0.0
    %613 = vmatpush1.msra.mxu0 0.0
    %614 = vmatprep.subr.mxu0 0.0
    %615 = vmatpush1.msra.mxu0 0.0
    %616 = vmatprep.subr.mxu0 0.0
    %617 = vmatpush1.msra.mxu0 0.0
    %618 = vmatprep.subr.mxu0 0.0
    %619 = vmatpush1.msra.mxu0 0.0
    %620 = vmatprep.subr.mxu0 0.0
    %621 = vmatpush1.msra.mxu0 0.0
    %622 = vmatprep.subr.mxu0 0.0
    %623 = vmatpush1.msra.mxu0 0.0
    %624 = vmatprep.subr.mxu0 0.0
    %625 = vmatpush1.msra.mxu0 0.0
    %626 = vmatprep.subr.mxu0 0.0
    %627 = vmatpush1.msra.mxu0 0.0
    %628 = vmatprep.subr.mxu0 0.0
    %629 = vmatpush1.msra.mxu0 0.0
    %630 = vmatprep.subr.mxu0 0.0
    %631 = vmatpush1.msra.mxu0 0.0
    %632 = vmatprep.subr.mxu0 0.0
    %633 = vmatpush1.msra.mxu0 0.0
    %634 = vmatprep.subr.mxu0 0.0
    %635 = vmatpush1.msra.mxu0 0.0
    %636 = vmatprep.subr.mxu0 0.0
    %637 = vmatpush1.msra.mxu0 0.0
    %638 = vmatprep.subr.mxu0 0.0
    %639 = vmatpush1.msra.mxu0 0.0
    %640 = vmatprep.mubr.f32.mxu0 0.0
    %641 = vmatmul.mubr.f32.gmra.mrb[0].mxu0 %v565
    %v642 = vpop.f32.mrb[0].mxu0
    %v643 = vadd.f32 0.0, %v642
    %v644 = vpop.f32.mrb[0].mxu0
    %645 = vmatprep.mubr.f32.mxu0 0.0
    %646 = vmatmul.mubr.f32.gmra.mrb[0].mxu0 %v568
    %v647 = vpop.f32.mrb[0].mxu0
    %v648 = vadd.f32 0.0, %v647
    %v649 = vpop.f32.mrb[0].mxu0
    %650 = vmatprep.mubr.f32.mxu0 0.0
    %651 = vmatmul.mubr.f32.gmra.mrb[0].mxu0 %v571
    %v652 = vpop.f32.mrb[0].mxu0
    %v653 = vadd.f32 0.0, %v652
    %v654 = vpop.f32.mrb[0].mxu0
    %655 = vmatprep.mubr.f32.mxu0 0.0
    %656 = vmatmul.mubr.f32.gmra.mrb[0].mxu0 %v574
    %v657 = vpop.f32.mrb[0].mxu0
    %v658 = vadd.f32 0.0, %v657
    %v659 = vpop.f32.mrb[0].mxu0
    %660 = vdwg.mxu0
    %v661 = vsel %vm480, %v643, -inf
    %v662 = vsel %vm480, %v648, -inf
    %v663 = vsel %vm480, %v653, -inf
    %v664 = vsel %vm480, %v658, -inf
    %v665 = vmax.f32 %v661, %v662
    %v666 = vmax.f32 %v663, %v664
    %v667 = vmax.f32 %v665, %v666
    %v668 = vrot.slane %v667, 4
    %v669 = vmax.f32 %v667, %v668
    %v670 = vrot.slane %v669, 2
    %v671 = vmax.f32 %v669, %v670
    %v672 = vrot.slane %v671, 1
    %v673 = vmax.f32 %v671, %v672
    %v674 = vsub.f32 %v643, %v673
    %v675 = vsub.f32 %v648, %v673
    %v676 = vsub.f32 %v653, %v673
    %v677 = vsub.f32 %v658, %v673
    %v678 = vmul.f32 %v674, 1.442695
    %v679 = vpow.pop %v678
    %v680 = vmul.f32 %v675, 1.442695
    %v681 = vpow.pop %v680
    %v682 = vmul.f32 %v676, 1.442695
    %v683 = vpow.pop %v682
    %v684 = vmul.f32 %v677, 1.442695
    %v685 = vpow.pop %v684
    %v686 = vsel %vm480, %v679, 0.0
    %v687 = vsel %vm480, %v681, 0.0
    %v688 = vadd.f32 %v686, %v687
    %v689 = vsel %vm480, %v683, 0.0
    %v690 = vadd.f32 %v688, %v689
    %v691 = vsel %vm480, %v685, 0.0
    %v692 = vadd.f32 %v690, %v691
    %v693 = vrot.slane %v692, 4
    %v694 = vadd.f32 %v692, %v693
    %v695 = vrot.slane %v694, 2
    %v696 = vadd.f32 %v694, %v695
    %v697 = vrot.slane %v696, 1
    %v698 = vadd.f32 %v696, %v697
    %v699 = vlog2.pop %v698
    %v700 = vmul.f32 %v699, 0.6931472
    %v701 = vsub.f32 %v674, %v700
    %v702 = vsub.f32 %v675, %v700
    %v703 = vsub.f32 %v676, %v700
    %v704 = vsub.f32 %v677, %v700
    %v705 = vmul.f32 %v701, 1.442695
    %v706 = vpow.pop %v705
    %v707 = vmul.f32 %v702, 1.442695
    %v708 = vpow.pop %v707
    %v709 = vmul.f32 %v703, 1.442695
    %v710 = vpow.pop %v709
    %v711 = vmul.f32 %v704, 1.442695
    %v712 = vpow.pop %v711
    %714 = vset.pattern.permute.xlu0 0
    %715 = vperm.xlu0 %714, %v706
    %v716 = vpop.permute.xlu0 %715
    %719 = vset.pattern.permute.xlu0 0
    %720 = vperm.xlu0 %719, %v708
    %v721 = vpop.permute.xlu0 %720
    %724 = vset.pattern.permute.xlu0 0
    %725 = vperm.xlu0 %724, %v710
    %v726 = vpop.permute.xlu0 %725
    %729 = vset.pattern.permute.xlu0 0
    %730 = vperm.xlu0 %729, %v712
    %v731 = vpop.permute.xlu0 %730
    %v733 = vmul.f32 %v716, %v297
    %v734 = vmul.f32 %v716, %v298
    %v735 = vmul.f32 %v721, %v301
    %v736 = vmul.f32 %v721, %v302
    %v737 = vmul.f32 %v726, %v305
    %v738 = vmul.f32 %v726, %v306
    %v739 = vmul.f32 %v731, %v309
    %v740 = vmul.f32 %v731, %v310
    %v741 = vadd.f32 %v733, %v735
    %v742 = vadd.f32 %v741, %v737
    %v743 = vadd.f32 %v742, %v739
    %v744 = vrot.slane %v743, 4
    %v745 = vadd.f32 %v743, %v744
    %v746 = vrot.slane %v745, 2
    %v747 = vadd.f32 %v745, %v746
    %v748 = vrot.slane %v747, 1
    %v749 = vadd.f32 %v747, %v748
    %v750 = vadd.f32 %v734, %v736
    %v751 = vadd.f32 %v750, %v738
    %v752 = vadd.f32 %v751, %v740
    %v753 = vrot.slane %v752, 4
    %v754 = vadd.f32 %v752, %v753
    %v755 = vrot.slane %v754, 2
    %v756 = vadd.f32 %v754, %v755
    %v757 = vrot.slane %v756, 1
    %v758 = vadd.f32 %v756, %v757
    %763 = vrot.lane.b32.xlu0 %v342, 96
    %v764 = vpop.permute.xlu0 %763
    %765 = vrot.lane.b32.xlu0 %v343, 96
    %v766 = vpop.permute.xlu0 %765
    %767 = vrot.lane.b32.xlu0 %v344, 96
    %v768 = vpop.permute.xlu0 %767
    %769 = vrot.lane.b32.xlu0 %v345, 96
    %v770 = vpop.permute.xlu0 %769
    %v775 = vsel %vm386, %v342, 0
    %v777 = vsel %vm386, %v343, 0
    %v779 = vsel %vm386, %v344, 0
    %v781 = vsel %vm386, %v345, 0
    %783 = vmatprep.subr.mxu0 0.0
    %784 = vmatpush1.msra.mxu0 %v360
    %785 = vmatprep.subr.mxu0 0.0
    %786 = vmatpush1.msra.mxu0 %v363
    %787 = vmatprep.subr.mxu0 0.0
    %788 = vmatpush1.msra.mxu0 %v366
    %789 = vmatprep.subr.mxu0 0.0
    %790 = vmatpush1.msra.mxu0 %v369
    %791 = vmatprep.subr.mxu0 0.0
    %792 = vmatpush1.msra.mxu0 0.0
    %793 = vmatprep.subr.mxu0 0.0
    %794 = vmatpush1.msra.mxu0 0.0
    %795 = vmatprep.subr.mxu0 0.0
    %796 = vmatpush1.msra.mxu0 0.0
    %797 = vmatprep.subr.mxu0 0.0
    %798 = vmatpush1.msra.mxu0 0.0
    %799 = vmatprep.subr.mxu0 0.0
    %800 = vmatpush1.msra.mxu0 0.0
    %801 = vmatprep.subr.mxu0 0.0
    %802 = vmatpush1.msra.mxu0 0.0
    %803 = vmatprep.subr.mxu0 0.0
    %804 = vmatpush1.msra.mxu0 0.0
    %805 = vmatprep.subr.mxu0 0.0
    %806 = vmatpush1.msra.mxu0 0.0
    %807 = vmatprep.subr.mxu0 0.0
    %808 = vmatpush1.msra.mxu0 0.0
    %809 = vmatprep.subr.mxu0 0.0
    %810 = vmatpush1.msra.mxu0 0.0
    %811 = vmatprep.subr.mxu0 0.0
    %812 = vmatpush1.msra.mxu0 0.0
    %813 = vmatprep.subr.mxu0 0.0
    %814 = vmatpush1.msra.mxu0 0.0
    %815 = vmatprep.subr.mxu0 0.0
    %816 = vmatpush1.msra.mxu0 0.0
    %817 = vmatprep.subr.mxu0 0.0
    %818 = vmatpush1.msra.mxu0 0.0
    %819 = vmatprep.subr.mxu0 0.0
    %820 = vmatpush1.msra.mxu0 0.0
    %821 = vmatprep.subr.mxu0 0.0
    %822 = vmatpush1.msra.mxu0 0.0
    %823 = vmatprep.subr.mxu0 0.0
    %824 = vmatpush1.msra.mxu0 0.0
    %825 = vmatprep.subr.mxu0 0.0
    %826 = vmatpush1.msra.mxu0 0.0
    %827 = vmatprep.subr.mxu0 0.0
    %828 = vmatpush1.msra.mxu0 0.0
    %829 = vmatprep.subr.mxu0 0.0
    %830 = vmatpush1.msra.mxu0 0.0
    %831 = vmatprep.subr.mxu0 0.0
    %832 = vmatpush1.msra.mxu0 0.0
    %833 = vmatprep.subr.mxu0 0.0
    %834 = vmatpush1.msra.mxu0 0.0
    %835 = vmatprep.subr.mxu0 0.0
    %836 = vmatpush1.msra.mxu0 0.0
    %837 = vmatprep.subr.mxu0 0.0
    %838 = vmatpush1.msra.mxu0 0.0
    %839 = vmatprep.subr.mxu0 0.0
    %840 = vmatpush1.msra.mxu0 0.0
    %841 = vmatprep.subr.mxu0 0.0
    %842 = vmatpush1.msra.mxu0 0.0
    %843 = vmatprep.subr.mxu0 0.0
    %844 = vmatpush1.msra.mxu0 0.0
    %845 = vmatprep.subr.mxu0 0.0
    %846 = vmatpush1.msra.mxu0 0.0
    %847 = vmatprep.mubr.f32.mxu0 0.0
    %848 = vmatmul.mubr.f32.gmra.mrb[0].mxu0 %v775
    %v849 = vpop.f32.mrb[0].mxu0
    %v850 = vadd.f32 %v764, %v849
    %v851 = vpop.f32.mrb[0].mxu0
    %852 = vmatprep.mubr.f32.mxu0 0.0
    %853 = vmatmul.mubr.f32.gmra.mrb[0].mxu0 %v777
    %v854 = vpop.f32.mrb[0].mxu0
    %v855 = vadd.f32 %v766, %v854
    %v856 = vpop.f32.mrb[0].mxu0
    %857 = vmatprep.mubr.f32.mxu0 0.0
    %858 = vmatmul.mubr.f32.gmra.mrb[0].mxu0 %v779
    %v859 = vpop.f32.mrb[0].mxu0
    %v860 = vadd.f32 %v768, %v859
    %v861 = vpop.f32.mrb[0].mxu0
    %862 = vmatprep.mubr.f32.mxu0 0.0
    %863 = vmatmul.mubr.f32.gmra.mrb[0].mxu0 %v781
    %v864 = vpop.f32.mrb[0].mxu0
    %v865 = vadd.f32 %v770, %v864
    %v866 = vpop.f32.mrb[0].mxu0
    %867 = vdwg.mxu0
    %v868 = vsel %vm480, %v850, -inf
    %v869 = vsel %vm480, %v855, -inf
    %v870 = vmax.f32 %v868, %v869
    %v871 = vrot.slane %v870, 4
    %v872 = vmax.f32 %v870, %v871
    %v873 = vrot.slane %v872, 2
    %v874 = vmax.f32 %v872, %v873
    %v875 = vrot.slane %v874, 1
    %v876 = vmax.f32 %v874, %v875
    %v877 = vsub.f32 %v850, %v876
    %v878 = vsub.f32 %v855, %v876
    %v879 = vmul.f32 %v877, 1.442695
    %v880 = vpow.pop %v879
    %v881 = vmul.f32 %v878, 1.442695
    %v882 = vpow.pop %v881
    %v883 = vsel %vm480, %v880, 0.0
    %v884 = vsel %vm480, %v882, 0.0
    %v885 = vadd.f32 %v883, %v884
    %v886 = vrot.slane %v885, 4
    %v887 = vadd.f32 %v885, %v886
    %v888 = vrot.slane %v887, 2
    %v889 = vadd.f32 %v887, %v888
    %v890 = vrot.slane %v889, 1
    %v891 = vadd.f32 %v889, %v890
    %v892 = vlog2.pop %v891
    %v893 = vmul.f32 %v892, 0.6931472
    %v894 = vsub.f32 %v877, %v893
    %v895 = vsub.f32 %v878, %v893
    %v896 = vsel %vm480, %v860, -inf
    %v897 = vsel %vm480, %v865, -inf
    %v898 = vmax.f32 %v896, %v897
    %v899 = vrot.slane %v898, 4
    %v900 = vmax.f32 %v898, %v899
    %v901 = vrot.slane %v900, 2
    %v902 = vmax.f32 %v900, %v901
    %v903 = vrot.slane %v902, 1
    %v904 = vmax.f32 %v902, %v903
    %v905 = vsub.f32 %v860, %v904
    %v906 = vsub.f32 %v865, %v904
    %v907 = vmul.f32 %v905, 1.442695
    %v908 = vpow.pop %v907
    %v909 = vmul.f32 %v906, 1.442695
    %v910 = vpow.pop %v909
    %v911 = vsel %vm480, %v908, 0.0
    %v912 = vsel %vm480, %v910, 0.0
    %v913 = vadd.f32 %v911, %v912
    %v914 = vrot.slane %v913, 4
    %v915 = vadd.f32 %v913, %v914
    %v916 = vrot.slane %v915, 2
    %v917 = vadd.f32 %v915, %v916
    %v918 = vrot.slane %v917, 1
    %v919 = vadd.f32 %v917, %v918
    %v920 = vlog2.pop %v919
    %v921 = vmul.f32 %v920, 0.6931472
    %v922 = vsub.f32 %v905, %v921
    %v923 = vsub.f32 %v906, %v921
    %v924 = vmul.f32 %v894, 1.442695
    %v925 = vpow.pop %v924
    %v926 = vmul.f32 %v895, 1.442695
    %v927 = vpow.pop %v926
    %v928 = vmul.f32 %v922, 1.442695
    %v929 = vpow.pop %v928
    %v930 = vmul.f32 %v923, 1.442695
    %v931 = vpow.pop %v930
    %v932 = vsub.f32 %v922, %v894
    %v933 = vsub.f32 %v923, %v895
    %v934 = vmul.f32 %v929, %v932
    %v935 = vmul.f32 %v931, %v933
    %v936 = vsel %vm480, %v934, 0.0
    %v937 = vsel %vm480, %v935, 0.0
    %v938 = vadd.f32 %v936, %v937
    %v939 = vrot.slane %v938, 4
    %v940 = vadd.f32 %v938, %v939
    %v941 = vrot.slane %v940, 2
    %v942 = vadd.f32 %v940, %v941
    %v943 = vrot.slane %v942, 1
    %v944 = vadd.f32 %v942, %v943
    %v945 = vsub.f32 %v925, %v929
    %v946 = vsub.f32 %v927, %v931
    %v947 = vsub.f32 %v932, %v944
    %v948 = vsub.f32 %v933, %v944
    %v949 = vmul.f32 %v929, %v947
    %v950 = vmul.f32 %v931, %v948
    %v952 = vsel %vm386, %v338, 0
    %v955 = vsel %vm386, %v339, 0
    %v958 = vsel %vm386, %v340, 0
    %v961 = vsel %vm386, %v341, 0
    %963 = vmatprep.subr.mxu0 0.0
    %964 = vmatpush1.msra.mxu0 %v945
    %965 = vmatprep.subr.mxu0 0.0
    %966 = vmatpush1.msra.mxu0 %v946
    %967 = vmatprep.subr.mxu0 0.0
    %968 = vmatpush1.msra.mxu0 %v949
    %969 = vmatprep.subr.mxu0 0.0
    %970 = vmatpush1.msra.mxu0 %v950
    %971 = vmatprep.subr.mxu0 0.0
    %972 = vmatpush1.msra.mxu0 0.0
    %973 = vmatprep.subr.mxu0 0.0
    %974 = vmatpush1.msra.mxu0 0.0
    %975 = vmatprep.subr.mxu0 0.0
    %976 = vmatpush1.msra.mxu0 0.0
    %977 = vmatprep.subr.mxu0 0.0
    %978 = vmatpush1.msra.mxu0 0.0
    %979 = vmatprep.subr.mxu0 0.0
    %980 = vmatpush1.msra.mxu0 0.0
    %981 = vmatprep.subr.mxu0 0.0
    %982 = vmatpush1.msra.mxu0 0.0
    %983 = vmatprep.subr.mxu0 0.0
    %984 = vmatpush1.msra.mxu0 0.0
    %985 = vmatprep.subr.mxu0 0.0
    %986 = vmatpush1.msra.mxu0 0.0
    %987 = vmatprep.subr.mxu0 0.0
    %988 = vmatpush1.msra.mxu0 0.0
    %989 = vmatprep.subr.mxu0 0.0
    %990 = vmatpush1.msra.mxu0 0.0
    %991 = vmatprep.subr.mxu0 0.0
    %992 = vmatpush1.msra.mxu0 0.0
    %993 = vmatprep.subr.mxu0 0.0
    %994 = vmatpush1.msra.mxu0 0.0
    %995 = vmatprep.subr.mxu0 0.0
    %996 = vmatpush1.msra.mxu0 0.0
    %997 = vmatprep.subr.mxu0 0.0
    %998 = vmatpush1.msra.mxu0 0.0
    %999 = vmatprep.subr.mxu0 0.0
    %1000 = vmatpush1.msra.mxu0 0.0
    %1001 = vmatprep.subr.mxu0 0.0
    %1002 = vmatpush1.msra.mxu0 0.0
    %1003 = vmatprep.subr.mxu0 0.0
    %1004 = vmatpush1.msra.mxu0 0.0
    %1005 = vmatprep.subr.mxu0 0.0
    %1006 = vmatpush1.msra.mxu0 0.0
    %1007 = vmatprep.subr.mxu0 0.0
    %1008 = vmatpush1.msra.mxu0 0.0
    %1009 = vmatprep.subr.mxu0 0.0
    %1010 = vmatpush1.msra.mxu0 0.0
    %1011 = vmatprep.subr.mxu0 0.0
    %1012 = vmatpush1.msra.mxu0 0.0
    %1013 = vmatprep.subr.mxu0 0.0
    %1014 = vmatpush1.msra.mxu0 0.0
    %1015 = vmatprep.subr.mxu0 0.0
    %1016 = vmatpush1.msra.mxu0 0.0
    %1017 = vmatprep.subr.mxu0 0.0
    %1018 = vmatpush1.msra.mxu0 0.0
    %1019 = vmatprep.subr.mxu0 0.0
    %1020 = vmatpush1.msra.mxu0 0.0
    %1021 = vmatprep.subr.mxu0 0.0
    %1022 = vmatpush1.msra.mxu0 0.0
    %1023 = vmatprep.subr.mxu0 0.0
    %1024 = vmatpush1.msra.mxu0 0.0
    %1025 = vmatprep.subr.mxu0 0.0
    %1026 = vmatpush1.msra.mxu0 0.0
    %1027 = vmatprep.mubr.f32.mxu0 0.0
    %1028 = vmatmul.mubr.f32.gmra.mrb[0].mxu0 %v952
    %v1029 = vpop.f32.mrb[0].mxu0
    %v1030 = vadd.f32 0.0, %v1029
    %v1031 = vpop.f32.mrb[0].mxu0
    %1032 = vmatprep.mubr.f32.mxu0 0.0
    %1033 = vmatmul.mubr.f32.gmra.mrb[0].mxu0 %v955
    %v1034 = vpop.f32.mrb[0].mxu0
    %v1035 = vadd.f32 0.0, %v1034
    %v1036 = vpop.f32.mrb[0].mxu0
    %1037 = vmatprep.mubr.f32.mxu0 0.0
    %1038 = vmatmul.mubr.f32.gmra.mrb[0].mxu0 %v958
    %v1039 = vpop.f32.mrb[0].mxu0
    %v1040 = vadd.f32 0.0, %v1039
    %v1041 = vpop.f32.mrb[0].mxu0
    %1042 = vmatprep.mubr.f32.mxu0 0.0
    %1043 = vmatmul.mubr.f32.gmra.mrb[0].mxu0 %v961
    %v1044 = vpop.f32.mrb[0].mxu0
    %v1045 = vadd.f32 0.0, %v1044
    %v1046 = vpop.f32.mrb[0].mxu0
    %1047 = vdwg.mxu0
    %v1048 = vsel %vm480, %v1030, -inf
    %v1049 = vsel %vm480, %v1035, -inf
    %v1050 = vsel %vm480, %v1040, -inf
    %v1051 = vsel %vm480, %v1045, -inf
    %v1052 = vmax.f32 %v1048, %v1049
    %v1053 = vmax.f32 %v1050, %v1051
    %v1054 = vmax.f32 %v1052, %v1053
    %v1055 = vrot.slane %v1054, 4
    %v1056 = vmax.f32 %v1054, %v1055
    %v1057 = vrot.slane %v1056, 2
    %v1058 = vmax.f32 %v1056, %v1057
    %v1059 = vrot.slane %v1058, 1
    %v1060 = vmax.f32 %v1058, %v1059
    %v1061 = vsub.f32 %v1030, %v1060
    %v1062 = vsub.f32 %v1035, %v1060
    %v1063 = vsub.f32 %v1040, %v1060
    %v1064 = vsub.f32 %v1045, %v1060
    %v1065 = vmul.f32 %v1061, 1.442695
    %v1066 = vpow.pop %v1065
    %v1067 = vmul.f32 %v1062, 1.442695
    %v1068 = vpow.pop %v1067
    %v1069 = vmul.f32 %v1063, 1.442695
    %v1070 = vpow.pop %v1069
    %v1071 = vmul.f32 %v1064, 1.442695
    %v1072 = vpow.pop %v1071
    %v1073 = vsel %vm480, %v1066, 0.0
    %v1074 = vsel %vm480, %v1068, 0.0
    %v1075 = vadd.f32 %v1073, %v1074
    %v1076 = vsel %vm480, %v1070, 0.0
    %v1077 = vadd.f32 %v1075, %v1076
    %v1078 = vsel %vm480, %v1072, 0.0
    %v1079 = vadd.f32 %v1077, %v1078
    %v1080 = vrot.slane %v1079, 4
    %v1081 = vadd.f32 %v1079, %v1080
    %v1082 = vrot.slane %v1081, 2
    %v1083 = vadd.f32 %v1081, %v1082
    %v1084 = vrot.slane %v1083, 1
    %v1085 = vadd.f32 %v1083, %v1084
    %v1086 = vlog2.pop %v1085
    %v1087 = vmul.f32 %v1086, 0.6931472
    %v1088 = vsub.f32 %v1061, %v1087
    %v1089 = vsub.f32 %v1062, %v1087
    %v1090 = vsub.f32 %v1063, %v1087
    %v1091 = vsub.f32 %v1064, %v1087
    %v1092 = vmul.f32 %v1088, 1.442695
    %v1093 = vpow.pop %v1092
    %v1094 = vmul.f32 %v1089, 1.442695
    %v1095 = vpow.pop %v1094
    %v1096 = vmul.f32 %v1090, 1.442695
    %v1097 = vpow.pop %v1096
    %v1098 = vmul.f32 %v1091, 1.442695
    %v1099 = vpow.pop %v1098
    %1101 = vset.pattern.permute.xlu0 0
    %1102 = vperm.xlu0 %1101, %v1093
    %v1103 = vpop.permute.xlu0 %1102
    %1106 = vset.pattern.permute.xlu0 0
    %1107 = vperm.xlu0 %1106, %v1095
    %v1108 = vpop.permute.xlu0 %1107
    %1111 = vset.pattern.permute.xlu0 0
    %1112 = vperm.xlu0 %1111, %v1097
    %v1113 = vpop.permute.xlu0 %1112
    %1116 = vset.pattern.permute.xlu0 0
    %1117 = vperm.xlu0 %1116, %v1099
    %v1118 = vpop.permute.xlu0 %1117
    %v1120 = vmul.f32 %v1103, %v313
    %v1121 = vmul.f32 %v1103, %v314
    %v1122 = vmul.f32 %v1108, %v317
    %v1123 = vmul.f32 %v1108, %v318
    %v1124 = vmul.f32 %v1113, %v321
    %v1125 = vmul.f32 %v1113, %v322
    %v1126 = vmul.f32 %v1118, %v325
    %v1127 = vmul.f32 %v1118, %v326
    %v1128 = vadd.f32 %v1120, %v1122
    %v1129 = vadd.f32 %v1128, %v1124
    %v1130 = vadd.f32 %v1129, %v1126
    %v1131 = vrot.slane %v1130, 4
    %v1132 = vadd.f32 %v1130, %v1131
    %v1133 = vrot.slane %v1132, 2
    %v1134 = vadd.f32 %v1132, %v1133
    %v1135 = vrot.slane %v1134, 1
    %v1136 = vadd.f32 %v1134, %v1135
    %v1137 = vadd.f32 %v1121, %v1123
    %v1138 = vadd.f32 %v1137, %v1125
    %v1139 = vadd.f32 %v1138, %v1127
    %v1140 = vrot.slane %v1139, 4
    %v1141 = vadd.f32 %v1139, %v1140
    %v1142 = vrot.slane %v1141, 2
    %v1143 = vadd.f32 %v1141, %v1142
    %v1144 = vrot.slane %v1143, 1
    %v1145 = vadd.f32 %v1143, %v1144
    %1146 = vst.msk [vmem:[#allocation2] sm:$0xff] %vm480, %v462
    %1147 = vst.msk [vmem:[#allocation2 + $0x8] sm:$0xff] %vm480, %v467
    %v1148 = vrcp.pop 3.0
    %v1149 = vmul.f32 %v472, %v1148
    %v1150 = vmul.f32 %v477, %v1148
    %v1151 = vsel %vm480, %v1149, -inf
    %v1152 = vsel %vm480, %v1150, -inf
    %v1153 = vmax.f32 %v1151, %v1152
    %v1154 = vrot.slane %v1153, 4
    %v1155 = vmax.f32 %v1153, %v1154
    %v1156 = vrot.slane %v1155, 2
    %v1157 = vmax.f32 %v1155, %v1156
    %v1158 = vrot.slane %v1157, 1
    %v1159 = vmax.f32 %v1157, %v1158
    %v1160 = vsub.f32 %v1149, %v1159
    %v1161 = vsub.f32 %v1150, %v1159
    %v1162 = vmul.f32 %v1160, 1.442695
    %v1163 = vpow.pop %v1162
    %v1164 = vmul.f32 %v1161, 1.442695
    %v1165 = vpow.pop %v1164
    %v1166 = vsel %vm480, %v1163, 0.0
    %v1167 = vsel %vm480, %v1165, 0.0
    %v1168 = vadd.f32 %v1166, %v1167
    %v1169 = vrot.slane %v1168, 4
    %v1170 = vadd.f32 %v1168, %v1169
    %v1171 = vrot.slane %v1170, 2
    %v1172 = vadd.f32 %v1170, %v1171
    %v1173 = vrot.slane %v1172, 1
    %v1174 = vadd.f32 %v1172, %v1173
    %v1175 = vlog2.pop %v1174
    %v1176 = vmul.f32 %v1175, 0.6931472
    %v1177 = vsub.f32 %v1160, %v1176
    %v1178 = vsub.f32 %v1161, %v1176
    %v1179 = vmul.f32 %v860, %v1148
    %v1180 = vmul.f32 %v865, %v1148
    %v1181 = vsel %vm480, %v1179, -inf
    %v1182 = vsel %vm480, %v1180, -inf
    %v1183 = vmax.f32 %v1181, %v1182
    %v1184 = vrot.slane %v1183, 4
    %v1185 = vmax.f32 %v1183, %v1184
    %v1186 = vrot.slane %v1185, 2
    %v1187 = vmax.f32 %v1185, %v1186
    %v1188 = vrot.slane %v1187, 1
    %v1189 = vmax.f32 %v1187, %v1188
    %v1190 = vsub.f32 %v1179, %v1189
    %v1191 = vsub.f32 %v1180, %v1189
    %v1192 = vmul.f32 %v1190, 1.442695
    %v1193 = vpow.pop %v1192
    %v1194 = vmul.f32 %v1191, 1.442695
    %v1195 = vpow.pop %v1194
    %v1196 = vsel %vm480, %v1193, 0.0
    %v1197 = vsel %vm480, %v1195, 0.0
    %v1198 = vadd.f32 %v1196, %v1197
    %v1199 = vrot.slane %v1198, 4
    %v1200 = vadd.f32 %v1198, %v1199
    %v1201 = vrot.slane %v1200, 2
    %v1202 = vadd.f32 %v1200, %v1201
    %v1203 = vrot.slane %v1202, 1
    %v1204 = vadd.f32 %v1202, %v1203
    %v1205 = vlog2.pop %v1204
    %v1206 = vmul.f32 %v1205, 0.6931472
    %v1207 = vsub.f32 %v1190, %v1206
    %v1208 = vsub.f32 %v1191, %v1206
    %v1209 = vmul.f32 %v1207, 1.442695
    %v1210 = vpow.pop %v1209
    %v1211 = vmul.f32 %v1208, 1.442695
    %v1212 = vpow.pop %v1211
    %v1213 = vsub.f32 %v1207, %v1177
    %v1214 = vsub.f32 %v1208, %v1178
    %v1215 = vmul.f32 %v1210, %v1213
    %v1216 = vmul.f32 %v1212, %v1214
    %v1217 = vsel %vm480, %v1215, 0.0
    %v1218 = vsel %vm480, %v1216, 0.0
    %v1219 = vadd.f32 %v1217, %v1218
    %1220 = vadd.xlane.f32.xlu0 %v1219
    %v1221 = vpop.xlane.xlu0 %1220
    %v1222 = vrot.slane %v1221, 4
    %v1223 = vadd.f32 %v1221, %v1222
    %v1224 = vrot.slane %v1223, 2
    %v1225 = vadd.f32 %v1223, %v1224
    %v1226 = vrot.slane %v1225, 1
    %v1227 = vadd.f32 %v1225, %v1226
    %s1228 = vtos %v1227
    %v1229 = vstv %s1228
    %v1230 = vadd.f32 %v1229, 0.0
    %v1231 = vmul.f32 %v462, %v1148
    %v1232 = vmul.f32 %v467, %v1148
    %v1233 = vmul.f32 %v850, %v1148
    %v1234 = vmul.f32 %v855, %v1148
    %v1235 = vxor.u32 %v1233, 2147483648
    %v1236 = vxor.u32 %v1234, 2147483648
    %v1237 = vmul.f32 %v1235, 1.442695
    %v1238 = vpow.pop %v1237
    %v1239 = vmul.f32 %v1236, 1.442695
    %v1240 = vpow.pop %v1239
    %v1241 = vadd.f32 %v1238, 1.0
    %v1242 = vadd.f32 %v1240, 1.0
    %v1243 = vrcp.pop %v1241
    %v1244 = vmul.f32 1.0, %v1243
    %v1245 = vrcp.pop %v1242
    %v1246 = vmul.f32 1.0, %v1245
    %v1247 = vsub.f32 0.0, %v1231
    %v1248 = vsub.f32 0.0, %v1232
    %v1249 = vmax.f32 %v1247, 0.0
    %v1250 = vmax.f32 %v1248, 0.0
    %v1251 = vand.u32 2147483647, %v1247
    %v1252 = vand.u32 2147483647, %v1248
    %v1253 = vsub.f32 0.0, %v1251
    %v1254 = vsub.f32 0.0, %v1252
    %v1255 = vmul.f32 %v1253, 1.442695
    %v1256 = vpow.pop %v1255
    %v1257 = vmul.f32 %v1254, 1.442695
    %v1258 = vpow.pop %v1257
    %v1259 = vadd.f32 %v1256, 1.0
    %v1260 = vadd.f32 %v1258, 1.0
    %v1261 = vlog2.pop %v1259
    %v1262 = vmul.f32 %v1261, 0.6931472
    %v1263 = vlog2.pop %v1260
    %v1264 = vmul.f32 %v1263, 0.6931472
    %v1265 = vadd.f32 %v1249, %v1262
    %v1266 = vadd.f32 %v1250, %v1264
    %v1267 = vsub.f32 0.0, %v1233
    %v1268 = vsub.f32 0.0, %v1234
    %v1269 = vmax.f32 %v1267, 0.0
    %v1270 = vmax.f32 %v1268, 0.0
    %v1271 = vand.u32 2147483647, %v1267
    %v1272 = vand.u32 2147483647, %v1268
    %v1273 = vsub.f32 0.0, %v1271
    %v1274 = vsub.f32 0.0, %v1272
    %v1275 = vmul.f32 %v1273, 1.442695
    %v1276 = vpow.pop %v1275
    %v1277 = vmul.f32 %v1274, 1.442695
    %v1278 = vpow.pop %v1277
    %v1279 = vadd.f32 %v1276, 1.0
    %v1280 = vadd.f32 %v1278, 1.0
    %v1281 = vlog2.pop %v1279
    %v1282 = vmul.f32 %v1281, 0.6931472
    %v1283 = vlog2.pop %v1280
    %v1284 = vmul.f32 %v1283, 0.6931472
    %v1285 = vadd.f32 %v1269, %v1282
    %v1286 = vadd.f32 %v1270, %v1284
    %v1287 = vsub.f32 %v1265, %v1285
    %v1288 = vsub.f32 %v1266, %v1286
    %v1289 = vmul.f32 %v1244, %v1287
    %v1290 = vmul.f32 %v1246, %v1288
    %v1291 = vsel %vm480, %v1289, 0.0
    %v1292 = vsel %vm480, %v1290, 0.0
    %v1293 = vadd.f32 %v1291, %v1292
    %1294 = vadd.xlane.f32.xlu0 %v1293
    %v1295 = vpop.xlane.xlu0 %1294
    %v1296 = vrot.slane %v1295, 4
    %v1297 = vadd.f32 %v1295, %v1296
    %v1298 = vrot.slane %v1297, 2
    %v1299 = vadd.f32 %v1297, %v1298
    %v1300 = vrot.slane %v1299, 1
    %v1301 = vadd.f32 %v1299, %v1300
    %s1302 = vtos %v1301
    %v1303 = vstv %s1302
    %v1304 = vadd.f32 %v1303, 0.0
    %v1305 = vsub.f32 1.0, %v1244
    %v1306 = vsub.f32 1.0, %v1246
    %v1307 = vmax.f32 %v1231, 0.0
    %v1308 = vmax.f32 %v1232, 0.0
    %v1309 = vand.u32 2147483647, %v1231
    %v1310 = vand.u32 2147483647, %v1232
    %v1311 = vsub.f32 0.0, %v1309
    %v1312 = vsub.f32 0.0, %v1310
    %v1313 = vmul.f32 %v1311, 1.442695
    %v1314 = vpow.pop %v1313
    %v1315 = vmul.f32 %v1312, 1.442695
    %v1316 = vpow.pop %v1315
    %v1317 = vadd.f32 %v1314, 1.0
    %v1318 = vadd.f32 %v1316, 1.0
    %v1319 = vlog2.pop %v1317
    %v1320 = vmul.f32 %v1319, 0.6931472
    %v1321 = vlog2.pop %v1318
    %v1322 = vmul.f32 %v1321, 0.6931472
    %v1323 = vadd.f32 %v1307, %v1320
    %v1324 = vadd.f32 %v1308, %v1322
    %v1325 = vmax.f32 %v1233, 0.0
    %v1326 = vmax.f32 %v1234, 0.0
    %v1327 = vand.u32 2147483647, %v1233
    %v1328 = vand.u32 2147483647, %v1234
    %v1329 = vsub.f32 0.0, %v1327
    %v1330 = vsub.f32 0.0, %v1328
    %v1331 = vmul.f32 %v1329, 1.442695
    %v1332 = vpow.pop %v1331
    %v1333 = vmul.f32 %v1330, 1.442695
    %v1334 = vpow.pop %v1333
    %v1335 = vadd.f32 %v1332, 1.0
    %v1336 = vadd.f32 %v1334, 1.0
    %v1337 = vlog2.pop %v1335
    %v1338 = vmul.f32 %v1337, 0.6931472
    %v1339 = vlog2.pop %v1336
    %v1340 = vmul.f32 %v1339, 0.6931472
    %v1341 = vadd.f32 %v1325, %v1338
    %v1342 = vadd.f32 %v1326, %v1340
    %v1343 = vsub.f32 %v1323, %v1341
    %v1344 = vsub.f32 %v1324, %v1342
    %v1345 = vmul.f32 %v1305, %v1343
    %v1346 = vmul.f32 %v1306, %v1344
    %v1347 = vsel %vm480, %v1345, 0.0
    %v1348 = vsel %vm480, %v1346, 0.0
    %v1349 = vadd.f32 %v1347, %v1348
    %1350 = vadd.xlane.f32.xlu0 %v1349
    %v1351 = vpop.xlane.xlu0 %1350
    %v1352 = vrot.slane %v1351, 4
    %v1353 = vadd.f32 %v1351, %v1352
    %v1354 = vrot.slane %v1353, 2
    %v1355 = vadd.f32 %v1353, %v1354
    %v1356 = vrot.slane %v1355, 1
    %v1357 = vadd.f32 %v1355, %v1356
    %s1358 = vtos %v1357
    %v1359 = vstv %s1358
    %v1360 = vadd.f32 %v1359, 0.0
    %v1361 = vsub.f32 %v749, %v1136
    %v1362 = vsub.f32 %v758, %v1145
    %v1363 = vmul.f32 %v1361, %v1361
    %v1364 = vmul.f32 %v1362, %v1362
    %vm1365 = vcmask 1040384
    %v1366 = vsel %vm1365, %v1363, 0.0
    %v1367 = vsel %vm1365, %v1364, 0.0
    %v1368 = vadd.f32 %v1366, %v1367
    %1369 = vadd.xlane.f32.xlu0 %v1368
    %v1370 = vpop.xlane.xlu0 %1369
    %v1371 = vrot.slane %v1370, 4
    %v1372 = vadd.f32 %v1370, %v1371
    %v1373 = vrot.slane %v1372, 2
    %v1374 = vadd.f32 %v1372, %v1373
    %v1375 = vrot.slane %v1374, 1
    %v1376 = vadd.f32 %v1374, %v1375
    %s1377 = vtos %v1376
    %v1378 = vstv %s1377
    %v1379 = vadd.f32 %v1378, 0.0
    %v1380 = vmax.f32 %v299, %v300
    %1381 = vmax.xlane.f32.xlu0 %v1380
    %v1382 = vpop.xlane.xlu0 %1381
    %v1383 = vmax.f32 %v303, %v304
    %1384 = vmax.xlane.f32.xlu0 %v1383
    %v1385 = vpop.xlane.xlu0 %1384
    %v1386 = vmax.f32 %v307, %v308
    %1387 = vmax.xlane.f32.xlu0 %v1386
    %v1388 = vpop.xlane.xlu0 %1387
    %v1389 = vmax.f32 %v311, %v312
    %1390 = vmax.xlane.f32.xlu0 %v1389
    %v1391 = vpop.xlane.xlu0 %1390
    %v1392 = vmax.f32 %v315, %v316
    %1393 = vmax.xlane.f32.xlu0 %v1392
    %v1394 = vpop.xlane.xlu0 %1393
    %v1395 = vmax.f32 %v319, %v320
    %1396 = vmax.xlane.f32.xlu0 %v1395
    %v1397 = vpop.xlane.xlu0 %1396
    %v1398 = vmax.f32 %v323, %v324
    %1399 = vmax.xlane.f32.xlu0 %v1398
    %v1400 = vpop.xlane.xlu0 %1399
    %v1401 = vmax.f32 %v327, %v328
    %1402 = vmax.xlane.f32.xlu0 %v1401
    %v1403 = vpop.xlane.xlu0 %1402
    %1404 = vmatprep.subr.mxu0 0.0
    %1405 = vmatpush1.msra.mxu0 %v1382
    %1406 = vmatprep.subr.mxu0 0.0
    %1407 = vmatpush1.msra.mxu0 %v1385
    %1408 = vmatprep.subr.mxu0 0.0
    %1409 = vmatpush1.msra.mxu0 %v1388
    %1410 = vmatprep.subr.mxu0 0.0
    %1411 = vmatpush1.msra.mxu0 %v1391
    %1412 = vmatprep.subr.mxu0 0.0
    %1413 = vmatpush1.msra.mxu0 0.0
    %1414 = vmatprep.subr.mxu0 0.0
    %1415 = vmatpush1.msra.mxu0 0.0
    %1416 = vmatprep.subr.mxu0 0.0
    %1417 = vmatpush1.msra.mxu0 0.0
    %1418 = vmatprep.subr.mxu0 0.0
    %1419 = vmatpush1.msra.mxu0 0.0
    %1420 = vmatprep.subr.mxu0 0.0
    %1421 = vmatpush1.msra.mxu0 0.0
    %1422 = vmatprep.subr.mxu0 0.0
    %1423 = vmatpush1.msra.mxu0 0.0
    %1424 = vmatprep.subr.mxu0 0.0
    %1425 = vmatpush1.msra.mxu0 0.0
    %1426 = vmatprep.subr.mxu0 0.0
    %1427 = vmatpush1.msra.mxu0 0.0
    %1428 = vmatprep.subr.mxu0 0.0
    %1429 = vmatpush1.msra.mxu0 0.0
    %1430 = vmatprep.subr.mxu0 0.0
    %1431 = vmatpush1.msra.mxu0 0.0
    %1432 = vmatprep.subr.mxu0 0.0
    %1433 = vmatpush1.msra.mxu0 0.0
    %1434 = vmatprep.subr.mxu0 0.0
    %1435 = vmatpush1.msra.mxu0 0.0
    %1436 = vmatprep.subr.mxu0 0.0
    %1437 = vmatpush1.msra.mxu0 0.0
    %1438 = vmatprep.subr.mxu0 0.0
    %1439 = vmatpush1.msra.mxu0 0.0
    %1440 = vmatprep.subr.mxu0 0.0
    %1441 = vmatpush1.msra.mxu0 0.0
    %1442 = vmatprep.subr.mxu0 0.0
    %1443 = vmatpush1.msra.mxu0 0.0
    %1444 = vmatprep.subr.mxu0 0.0
    %1445 = vmatpush1.msra.mxu0 0.0
    %1446 = vmatprep.subr.mxu0 0.0
    %1447 = vmatpush1.msra.mxu0 0.0
    %1448 = vmatprep.subr.mxu0 0.0
    %1449 = vmatpush1.msra.mxu0 0.0
    %1450 = vmatprep.subr.mxu0 0.0
    %1451 = vmatpush1.msra.mxu0 0.0
    %1452 = vmatprep.subr.mxu0 0.0
    %1453 = vmatpush1.msra.mxu0 0.0
    %1454 = vmatprep.subr.mxu0 0.0
    %1455 = vmatpush1.msra.mxu0 0.0
    %1456 = vmatprep.subr.mxu0 0.0
    %1457 = vmatpush1.msra.mxu0 0.0
    %1458 = vmatprep.subr.mxu0 0.0
    %1459 = vmatpush1.msra.mxu0 0.0
    %1460 = vmatprep.subr.mxu0 0.0
    %1461 = vmatpush1.msra.mxu0 0.0
    %1462 = vmatprep.subr.mxu0 0.0
    %1463 = vmatpush1.msra.mxu0 0.0
    %1464 = vmatprep.subr.mxu0 0.0
    %1465 = vmatpush1.msra.mxu0 0.0
    %1466 = vmatprep.subr.mxu0 0.0
    %1467 = vmatpush1.msra.mxu0 0.0
    %1468 = vmatprep.mubr.f32.mxu0 0.0
    %1469 = vmatmul.mubr.f32.gmra.mrb[0].mxu0 %v387
    %v1470 = vpop.f32.mrb[0].mxu0
    %v1471 = vadd.f32 %v375, %v1470
    %v1472 = vpop.f32.mrb[0].mxu0
    %1473 = vmatprep.mubr.f32.mxu0 0.0
    %1474 = vmatmul.mubr.f32.gmra.mrb[0].mxu0 %v389
    %v1475 = vpop.f32.mrb[0].mxu0
    %v1476 = vadd.f32 %v377, %v1475
    %v1477 = vpop.f32.mrb[0].mxu0
    %1478 = vmatprep.mubr.f32.mxu0 0.0
    %1479 = vmatmul.mubr.f32.gmra.mrb[0].mxu0 %v391
    %v1480 = vpop.f32.mrb[0].mxu0
    %v1481 = vadd.f32 %v379, %v1480
    %v1482 = vpop.f32.mrb[0].mxu0
    %1483 = vmatprep.mubr.f32.mxu0 0.0
    %1484 = vmatmul.mubr.f32.gmra.mrb[0].mxu0 %v393
    %v1485 = vpop.f32.mrb[0].mxu0
    %v1486 = vadd.f32 %v381, %v1485
    %v1487 = vpop.f32.mrb[0].mxu0
    %1488 = vdwg.mxu0
    %v1489 = vsel %vm480, %v1471, -inf
    %v1490 = vsel %vm480, %v1476, -inf
    %v1491 = vmax.f32 %v1489, %v1490
    %v1492 = vrot.slane %v1491, 4
    %v1493 = vmax.f32 %v1491, %v1492
    %v1494 = vrot.slane %v1493, 2
    %v1495 = vmax.f32 %v1493, %v1494
    %v1496 = vrot.slane %v1495, 1
    %v1497 = vmax.f32 %v1495, %v1496
    %v1498 = vsub.f32 %v1471, %v1497
    %v1499 = vsub.f32 %v1476, %v1497
    %v1500 = vmul.f32 %v1498, 1.442695
    %v1501 = vpow.pop %v1500
    %v1502 = vmul.f32 %v1499, 1.442695
    %v1503 = vpow.pop %v1502
    %v1504 = vsel %vm480, %v1501, 0.0
    %v1505 = vsel %vm480, %v1503, 0.0
    %v1506 = vadd.f32 %v1504, %v1505
    %v1507 = vrot.slane %v1506, 4
    %v1508 = vadd.f32 %v1506, %v1507
    %v1509 = vrot.slane %v1508, 2
    %v1510 = vadd.f32 %v1508, %v1509
    %v1511 = vrot.slane %v1510, 1
    %v1512 = vadd.f32 %v1510, %v1511
    %v1513 = vlog2.pop %v1512
    %v1514 = vmul.f32 %v1513, 0.6931472
    %v1515 = vsub.f32 %v1498, %v1514
    %v1516 = vsub.f32 %v1499, %v1514
    %v1517 = vsel %vm480, %v1481, -inf
    %v1518 = vsel %vm480, %v1486, -inf
    %v1519 = vmax.f32 %v1517, %v1518
    %v1520 = vrot.slane %v1519, 4
    %v1521 = vmax.f32 %v1519, %v1520
    %v1522 = vrot.slane %v1521, 2
    %v1523 = vmax.f32 %v1521, %v1522
    %v1524 = vrot.slane %v1523, 1
    %v1525 = vmax.f32 %v1523, %v1524
    %v1526 = vsub.f32 %v1481, %v1525
    %v1527 = vsub.f32 %v1486, %v1525
    %v1528 = vmul.f32 %v1526, 1.442695
    %v1529 = vpow.pop %v1528
    %v1530 = vmul.f32 %v1527, 1.442695
    %v1531 = vpow.pop %v1530
    %v1532 = vsel %vm480, %v1529, 0.0
    %v1533 = vsel %vm480, %v1531, 0.0
    %v1534 = vadd.f32 %v1532, %v1533
    %v1535 = vrot.slane %v1534, 4
    %v1536 = vadd.f32 %v1534, %v1535
    %v1537 = vrot.slane %v1536, 2
    %v1538 = vadd.f32 %v1536, %v1537
    %v1539 = vrot.slane %v1538, 1
    %v1540 = vadd.f32 %v1538, %v1539
    %v1541 = vlog2.pop %v1540
    %v1542 = vmul.f32 %v1541, 0.6931472
    %v1543 = vsub.f32 %v1526, %v1542
    %v1544 = vsub.f32 %v1527, %v1542
    %v1545 = vmul.f32 %v1515, 1.442695
    %v1546 = vpow.pop %v1545
    %v1547 = vmul.f32 %v1516, 1.442695
    %v1548 = vpow.pop %v1547
    %v1549 = vmul.f32 %v1543, 1.442695
    %v1550 = vpow.pop %v1549
    %v1551 = vmul.f32 %v1544, 1.442695
    %v1552 = vpow.pop %v1551
    %v1553 = vsub.f32 %v1543, %v1515
    %v1554 = vsub.f32 %v1544, %v1516
    %v1555 = vmul.f32 %v1550, %v1553
    %v1556 = vmul.f32 %v1552, %v1554
    %v1557 = vsel %vm480, %v1555, 0.0
    %v1558 = vsel %vm480, %v1556, 0.0
    %v1559 = vadd.f32 %v1557, %v1558
    %v1560 = vrot.slane %v1559, 4
    %v1561 = vadd.f32 %v1559, %v1560
    %v1562 = vrot.slane %v1561, 2
    %v1563 = vadd.f32 %v1561, %v1562
    %v1564 = vrot.slane %v1563, 1
    %v1565 = vadd.f32 %v1563, %v1564
    %v1566 = vsub.f32 %v1546, %v1550
    %v1567 = vsub.f32 %v1548, %v1552
    %v1568 = vsub.f32 %v1553, %v1565
    %v1569 = vsub.f32 %v1554, %v1565
    %v1570 = vmul.f32 %v1550, %v1568
    %v1571 = vmul.f32 %v1552, %v1569
    %1572 = vmatprep.subr.mxu0 0.0
    %1573 = vmatpush1.msra.mxu0 %v1566
    %1574 = vmatprep.subr.mxu0 0.0
    %1575 = vmatpush1.msra.mxu0 %v1567
    %1576 = vmatprep.subr.mxu0 0.0
    %1577 = vmatpush1.msra.mxu0 %v1570
    %1578 = vmatprep.subr.mxu0 0.0
    %1579 = vmatpush1.msra.mxu0 %v1571
    %1580 = vmatprep.subr.mxu0 0.0
    %1581 = vmatpush1.msra.mxu0 0.0
    %1582 = vmatprep.subr.mxu0 0.0
    %1583 = vmatpush1.msra.mxu0 0.0
    %1584 = vmatprep.subr.mxu0 0.0
    %1585 = vmatpush1.msra.mxu0 0.0
    %1586 = vmatprep.subr.mxu0 0.0
    %1587 = vmatpush1.msra.mxu0 0.0
    %1588 = vmatprep.subr.mxu0 0.0
    %1589 = vmatpush1.msra.mxu0 0.0
    %1590 = vmatprep.subr.mxu0 0.0
    %1591 = vmatpush1.msra.mxu0 0.0
    %1592 = vmatprep.subr.mxu0 0.0
    %1593 = vmatpush1.msra.mxu0 0.0
    %1594 = vmatprep.subr.mxu0 0.0
    %1595 = vmatpush1.msra.mxu0 0.0
    %1596 = vmatprep.subr.mxu0 0.0
    %1597 = vmatpush1.msra.mxu0 0.0
    %1598 = vmatprep.subr.mxu0 0.0
    %1599 = vmatpush1.msra.mxu0 0.0
    %1600 = vmatprep.subr.mxu0 0.0
    %1601 = vmatpush1.msra.mxu0 0.0
    %1602 = vmatprep.subr.mxu0 0.0
    %1603 = vmatpush1.msra.mxu0 0.0
    %1604 = vmatprep.subr.mxu0 0.0
    %1605 = vmatpush1.msra.mxu0 0.0
    %1606 = vmatprep.subr.mxu0 0.0
    %1607 = vmatpush1.msra.mxu0 0.0
    %1608 = vmatprep.subr.mxu0 0.0
    %1609 = vmatpush1.msra.mxu0 0.0
    %1610 = vmatprep.subr.mxu0 0.0
    %1611 = vmatpush1.msra.mxu0 0.0
    %1612 = vmatprep.subr.mxu0 0.0
    %1613 = vmatpush1.msra.mxu0 0.0
    %1614 = vmatprep.subr.mxu0 0.0
    %1615 = vmatpush1.msra.mxu0 0.0
    %1616 = vmatprep.subr.mxu0 0.0
    %1617 = vmatpush1.msra.mxu0 0.0
    %1618 = vmatprep.subr.mxu0 0.0
    %1619 = vmatpush1.msra.mxu0 0.0
    %1620 = vmatprep.subr.mxu0 0.0
    %1621 = vmatpush1.msra.mxu0 0.0
    %1622 = vmatprep.subr.mxu0 0.0
    %1623 = vmatpush1.msra.mxu0 0.0
    %1624 = vmatprep.subr.mxu0 0.0
    %1625 = vmatpush1.msra.mxu0 0.0
    %1626 = vmatprep.subr.mxu0 0.0
    %1627 = vmatpush1.msra.mxu0 0.0
    %1628 = vmatprep.subr.mxu0 0.0
    %1629 = vmatpush1.msra.mxu0 0.0
    %1630 = vmatprep.subr.mxu0 0.0
    %1631 = vmatpush1.msra.mxu0 0.0
    %1632 = vmatprep.subr.mxu0 0.0
    %1633 = vmatpush1.msra.mxu0 0.0
    %1634 = vmatprep.subr.mxu0 0.0
    %1635 = vmatpush1.msra.mxu0 0.0
    %1636 = vmatprep.mubr.f32.mxu0 0.0
    %1637 = vmatmul.mubr.f32.gmra.mrb[0].mxu0 %v565
    %v1638 = vpop.f32.mrb[0].mxu0
    %v1639 = vadd.f32 0.0, %v1638
    %v1640 = vpop.f32.mrb[0].mxu0
    %1641 = vmatprep.mubr.f32.mxu0 0.0
    %1642 = vmatmul.mubr.f32.gmra.mrb[0].mxu0 %v568
    %v1643 = vpop.f32.mrb[0].mxu0
    %v1644 = vadd.f32 0.0, %v1643
    %v1645 = vpop.f32.mrb[0].mxu0
    %1646 = vmatprep.mubr.f32.mxu0 0.0
    %1647 = vmatmul.mubr.f32.gmra.mrb[0].mxu0 %v571
    %v1648 = vpop.f32.mrb[0].mxu0
    %v1649 = vadd.f32 0.0, %v1648
    %v1650 = vpop.f32.mrb[0].mxu0
    %1651 = vmatprep.mubr.f32.mxu0 0.0
    %1652 = vmatmul.mubr.f32.gmra.mrb[0].mxu0 %v574
    %v1653 = vpop.f32.mrb[0].mxu0
    %v1654 = vadd.f32 0.0, %v1653
    %v1655 = vpop.f32.mrb[0].mxu0
    %1656 = vdwg.mxu0
    %v1657 = vsel %vm480, %v1639, -inf
    %v1658 = vsel %vm480, %v1644, -inf
    %v1659 = vsel %vm480, %v1649, -inf
    %v1660 = vsel %vm480, %v1654, -inf
    %v1661 = vmax.f32 %v1657, %v1658
    %v1662 = vmax.f32 %v1659, %v1660
    %v1663 = vmax.f32 %v1661, %v1662
    %v1664 = vrot.slane %v1663, 4
    %v1665 = vmax.f32 %v1663, %v1664
    %v1666 = vrot.slane %v1665, 2
    %v1667 = vmax.f32 %v1665, %v1666
    %v1668 = vrot.slane %v1667, 1
    %v1669 = vmax.f32 %v1667, %v1668
    %v1670 = vsub.f32 %v1639, %v1669
    %v1671 = vsub.f32 %v1644, %v1669
    %v1672 = vsub.f32 %v1649, %v1669
    %v1673 = vsub.f32 %v1654, %v1669
    %v1674 = vmul.f32 %v1670, 1.442695
    %v1675 = vpow.pop %v1674
    %v1676 = vmul.f32 %v1671, 1.442695
    %v1677 = vpow.pop %v1676
    %v1678 = vmul.f32 %v1672, 1.442695
    %v1679 = vpow.pop %v1678
    %v1680 = vmul.f32 %v1673, 1.442695
    %v1681 = vpow.pop %v1680
    %v1682 = vsel %vm480, %v1675, 0.0
    %v1683 = vsel %vm480, %v1677, 0.0
    %v1684 = vadd.f32 %v1682, %v1683
    %v1685 = vsel %vm480, %v1679, 0.0
    %v1686 = vadd.f32 %v1684, %v1685
    %v1687 = vsel %vm480, %v1681, 0.0
    %v1688 = vadd.f32 %v1686, %v1687
    %v1689 = vrot.slane %v1688, 4
    %v1690 = vadd.f32 %v1688, %v1689
    %v1691 = vrot.slane %v1690, 2
    %v1692 = vadd.f32 %v1690, %v1691
    %v1693 = vrot.slane %v1692, 1
    %v1694 = vadd.f32 %v1692, %v1693
    %v1695 = vlog2.pop %v1694
    %v1696 = vmul.f32 %v1695, 0.6931472
    %v1697 = vsub.f32 %v1670, %v1696
    %v1698 = vsub.f32 %v1671, %v1696
    %v1699 = vsub.f32 %v1672, %v1696
    %v1700 = vsub.f32 %v1673, %v1696
    %v1701 = vmul.f32 %v1697, 1.442695
    %v1702 = vpow.pop %v1701
    %v1703 = vmul.f32 %v1698, 1.442695
    %v1704 = vpow.pop %v1703
    %v1705 = vmul.f32 %v1699, 1.442695
    %v1706 = vpow.pop %v1705
    %v1707 = vmul.f32 %v1700, 1.442695
    %v1708 = vpow.pop %v1707
    %1710 = vset.pattern.permute.xlu0 0
    %1711 = vperm.xlu0 %1710, %v1702
    %v1712 = vpop.permute.xlu0 %1711
    %1715 = vset.pattern.permute.xlu0 0
    %1716 = vperm.xlu0 %1715, %v1704
    %v1717 = vpop.permute.xlu0 %1716
    %1720 = vset.pattern.permute.xlu0 0
    %1721 = vperm.xlu0 %1720, %v1706
    %v1722 = vpop.permute.xlu0 %1721
    %1725 = vset.pattern.permute.xlu0 0
    %1726 = vperm.xlu0 %1725, %v1708
    %v1727 = vpop.permute.xlu0 %1726
    %v1729 = vmul.f32 %v1712, %v299
    %v1730 = vmul.f32 %v1712, %v300
    %v1731 = vmul.f32 %v1717, %v303
    %v1732 = vmul.f32 %v1717, %v304
    %v1733 = vmul.f32 %v1722, %v307
    %v1734 = vmul.f32 %v1722, %v308
    %v1735 = vmul.f32 %v1727, %v311
    %v1736 = vmul.f32 %v1727, %v312
    %v1737 = vadd.f32 %v1729, %v1731
    %v1738 = vadd.f32 %v1737, %v1733
    %v1739 = vadd.f32 %v1738, %v1735
    %v1740 = vrot.slane %v1739, 4
    %v1741 = vadd.f32 %v1739, %v1740
    %v1742 = vrot.slane %v1741, 2
    %v1743 = vadd.f32 %v1741, %v1742
    %v1744 = vrot.slane %v1743, 1
    %v1745 = vadd.f32 %v1743, %v1744
    %v1746 = vadd.f32 %v1730, %v1732
    %v1747 = vadd.f32 %v1746, %v1734
    %v1748 = vadd.f32 %v1747, %v1736
    %v1749 = vrot.slane %v1748, 4
    %v1750 = vadd.f32 %v1748, %v1749
    %v1751 = vrot.slane %v1750, 2
    %v1752 = vadd.f32 %v1750, %v1751
    %v1753 = vrot.slane %v1752, 1
    %v1754 = vadd.f32 %v1752, %v1753
    %1755 = vmatprep.subr.mxu0 0.0
    %1756 = vmatpush1.msra.mxu0 %v1394
    %1757 = vmatprep.subr.mxu0 0.0
    %1758 = vmatpush1.msra.mxu0 %v1397
    %1759 = vmatprep.subr.mxu0 0.0
    %1760 = vmatpush1.msra.mxu0 %v1400
    %1761 = vmatprep.subr.mxu0 0.0
    %1762 = vmatpush1.msra.mxu0 %v1403
    %1763 = vmatprep.subr.mxu0 0.0
    %1764 = vmatpush1.msra.mxu0 0.0
    %1765 = vmatprep.subr.mxu0 0.0
    %1766 = vmatpush1.msra.mxu0 0.0
    %1767 = vmatprep.subr.mxu0 0.0
    %1768 = vmatpush1.msra.mxu0 0.0
    %1769 = vmatprep.subr.mxu0 0.0
    %1770 = vmatpush1.msra.mxu0 0.0
    %1771 = vmatprep.subr.mxu0 0.0
    %1772 = vmatpush1.msra.mxu0 0.0
    %1773 = vmatprep.subr.mxu0 0.0
    %1774 = vmatpush1.msra.mxu0 0.0
    %1775 = vmatprep.subr.mxu0 0.0
    %1776 = vmatpush1.msra.mxu0 0.0
    %1777 = vmatprep.subr.mxu0 0.0
    %1778 = vmatpush1.msra.mxu0 0.0
    %1779 = vmatprep.subr.mxu0 0.0
    %1780 = vmatpush1.msra.mxu0 0.0
    %1781 = vmatprep.subr.mxu0 0.0
    %1782 = vmatpush1.msra.mxu0 0.0
    %1783 = vmatprep.subr.mxu0 0.0
    %1784 = vmatpush1.msra.mxu0 0.0
    %1785 = vmatprep.subr.mxu0 0.0
    %1786 = vmatpush1.msra.mxu0 0.0
    %1787 = vmatprep.subr.mxu0 0.0
    %1788 = vmatpush1.msra.mxu0 0.0
    %1789 = vmatprep.subr.mxu0 0.0
    %1790 = vmatpush1.msra.mxu0 0.0
    %1791 = vmatprep.subr.mxu0 0.0
    %1792 = vmatpush1.msra.mxu0 0.0
    %1793 = vmatprep.subr.mxu0 0.0
    %1794 = vmatpush1.msra.mxu0 0.0
    %1795 = vmatprep.subr.mxu0 0.0
    %1796 = vmatpush1.msra.mxu0 0.0
    %1797 = vmatprep.subr.mxu0 0.0
    %1798 = vmatpush1.msra.mxu0 0.0
    %1799 = vmatprep.subr.mxu0 0.0
    %1800 = vmatpush1.msra.mxu0 0.0
    %1801 = vmatprep.subr.mxu0 0.0
    %1802 = vmatpush1.msra.mxu0 0.0
    %1803 = vmatprep.subr.mxu0 0.0
    %1804 = vmatpush1.msra.mxu0 0.0
    %1805 = vmatprep.subr.mxu0 0.0
    %1806 = vmatpush1.msra.mxu0 0.0
    %1807 = vmatprep.subr.mxu0 0.0
    %1808 = vmatpush1.msra.mxu0 0.0
    %1809 = vmatprep.subr.mxu0 0.0
    %1810 = vmatpush1.msra.mxu0 0.0
    %1811 = vmatprep.subr.mxu0 0.0
    %1812 = vmatpush1.msra.mxu0 0.0
    %1813 = vmatprep.subr.mxu0 0.0
    %1814 = vmatpush1.msra.mxu0 0.0
    %1815 = vmatprep.subr.mxu0 0.0
    %1816 = vmatpush1.msra.mxu0 0.0
    %1817 = vmatprep.subr.mxu0 0.0
    %1818 = vmatpush1.msra.mxu0 0.0
    %1819 = vmatprep.mubr.f32.mxu0 0.0
    %1820 = vmatmul.mubr.f32.gmra.mrb[0].mxu0 %v775
    %v1821 = vpop.f32.mrb[0].mxu0
    %v1822 = vadd.f32 %v764, %v1821
    %v1823 = vpop.f32.mrb[0].mxu0
    %1824 = vmatprep.mubr.f32.mxu0 0.0
    %1825 = vmatmul.mubr.f32.gmra.mrb[0].mxu0 %v777
    %v1826 = vpop.f32.mrb[0].mxu0
    %v1827 = vadd.f32 %v766, %v1826
    %v1828 = vpop.f32.mrb[0].mxu0
    %1829 = vmatprep.mubr.f32.mxu0 0.0
    %1830 = vmatmul.mubr.f32.gmra.mrb[0].mxu0 %v779
    %v1831 = vpop.f32.mrb[0].mxu0
    %v1832 = vadd.f32 %v768, %v1831
    %v1833 = vpop.f32.mrb[0].mxu0
    %1834 = vmatprep.mubr.f32.mxu0 0.0
    %1835 = vmatmul.mubr.f32.gmra.mrb[0].mxu0 %v781
    %v1836 = vpop.f32.mrb[0].mxu0
    %v1837 = vadd.f32 %v770, %v1836
    %v1838 = vpop.f32.mrb[0].mxu0
    %1839 = vdwg.mxu0
    %v1840 = vsel %vm480, %v1822, -inf
    %v1841 = vsel %vm480, %v1827, -inf
    %v1842 = vmax.f32 %v1840, %v1841
    %v1843 = vrot.slane %v1842, 4
    %v1844 = vmax.f32 %v1842, %v1843
    %v1845 = vrot.slane %v1844, 2
    %v1846 = vmax.f32 %v1844, %v1845
    %v1847 = vrot.slane %v1846, 1
    %v1848 = vmax.f32 %v1846, %v1847
    %v1849 = vsub.f32 %v1822, %v1848
    %v1850 = vsub.f32 %v1827, %v1848
    %v1851 = vmul.f32 %v1849, 1.442695
    %v1852 = vpow.pop %v1851
    %v1853 = vmul.f32 %v1850, 1.442695
    %v1854 = vpow.pop %v1853
    %v1855 = vsel %vm480, %v1852, 0.0
    %v1856 = vsel %vm480, %v1854, 0.0
    %v1857 = vadd.f32 %v1855, %v1856
    %v1858 = vrot.slane %v1857, 4
    %v1859 = vadd.f32 %v1857, %v1858
    %v1860 = vrot.slane %v1859, 2
    %v1861 = vadd.f32 %v1859, %v1860
    %v1862 = vrot.slane %v1861, 1
    %v1863 = vadd.f32 %v1861, %v1862
    %v1864 = vlog2.pop %v1863
    %v1865 = vmul.f32 %v1864, 0.6931472
    %v1866 = vsub.f32 %v1849, %v1865
    %v1867 = vsub.f32 %v1850, %v1865
    %v1868 = vsel %vm480, %v1832, -inf
    %v1869 = vsel %vm480, %v1837, -inf
    %v1870 = vmax.f32 %v1868, %v1869
    %v1871 = vrot.slane %v1870, 4
    %v1872 = vmax.f32 %v1870, %v1871
    %v1873 = vrot.slane %v1872, 2
    %v1874 = vmax.f32 %v1872, %v1873
    %v1875 = vrot.slane %v1874, 1
    %v1876 = vmax.f32 %v1874, %v1875
    %v1877 = vsub.f32 %v1832, %v1876
    %v1878 = vsub.f32 %v1837, %v1876
    %v1879 = vmul.f32 %v1877, 1.442695
    %v1880 = vpow.pop %v1879
    %v1881 = vmul.f32 %v1878, 1.442695
    %v1882 = vpow.pop %v1881
    %v1883 = vsel %vm480, %v1880, 0.0
    %v1884 = vsel %vm480, %v1882, 0.0
    %v1885 = vadd.f32 %v1883, %v1884
    %v1886 = vrot.slane %v1885, 4
    %v1887 = vadd.f32 %v1885, %v1886
    %v1888 = vrot.slane %v1887, 2
    %v1889 = vadd.f32 %v1887, %v1888
    %v1890 = vrot.slane %v1889, 1
    %v1891 = vadd.f32 %v1889, %v1890
    %v1892 = vlog2.pop %v1891
    %v1893 = vmul.f32 %v1892, 0.6931472
    %v1894 = vsub.f32 %v1877, %v1893
    %v1895 = vsub.f32 %v1878, %v1893
    %v1896 = vmul.f32 %v1866, 1.442695
    %v1897 = vpow.pop %v1896
    %v1898 = vmul.f32 %v1867, 1.442695
    %v1899 = vpow.pop %v1898
    %v1900 = vmul.f32 %v1894, 1.442695
    %v1901 = vpow.pop %v1900
    %v1902 = vmul.f32 %v1895, 1.442695
    %v1903 = vpow.pop %v1902
    %v1904 = vsub.f32 %v1894, %v1866
    %v1905 = vsub.f32 %v1895, %v1867
    %v1906 = vmul.f32 %v1901, %v1904
    %v1907 = vmul.f32 %v1903, %v1905
    %v1908 = vsel %vm480, %v1906, 0.0
    %v1909 = vsel %vm480, %v1907, 0.0
    %v1910 = vadd.f32 %v1908, %v1909
    %v1911 = vrot.slane %v1910, 4
    %v1912 = vadd.f32 %v1910, %v1911
    %v1913 = vrot.slane %v1912, 2
    %v1914 = vadd.f32 %v1912, %v1913
    %v1915 = vrot.slane %v1914, 1
    %v1916 = vadd.f32 %v1914, %v1915
    %v1917 = vsub.f32 %v1897, %v1901
    %v1918 = vsub.f32 %v1899, %v1903
    %v1919 = vsub.f32 %v1904, %v1916
    %v1920 = vsub.f32 %v1905, %v1916
    %v1921 = vmul.f32 %v1901, %v1919
    %v1922 = vmul.f32 %v1903, %v1920
    %1923 = vmatprep.subr.mxu0 0.0
    %1924 = vmatpush1.msra.mxu0 %v1917
    %1925 = vmatprep.subr.mxu0 0.0
    %1926 = vmatpush1.msra.mxu0 %v1918
    %1927 = vmatprep.subr.mxu0 0.0
    %1928 = vmatpush1.msra.mxu0 %v1921
    %1929 = vmatprep.subr.mxu0 0.0
    %1930 = vmatpush1.msra.mxu0 %v1922
    %1931 = vmatprep.subr.mxu0 0.0
    %1932 = vmatpush1.msra.mxu0 0.0
    %1933 = vmatprep.subr.mxu0 0.0
    %1934 = vmatpush1.msra.mxu0 0.0
    %1935 = vmatprep.subr.mxu0 0.0
    %1936 = vmatpush1.msra.mxu0 0.0
    %1937 = vmatprep.subr.mxu0 0.0
    %1938 = vmatpush1.msra.mxu0 0.0
    %1939 = vmatprep.subr.mxu0 0.0
    %1940 = vmatpush1.msra.mxu0 0.0
    %1941 = vmatprep.subr.mxu0 0.0
    %1942 = vmatpush1.msra.mxu0 0.0
    %1943 = vmatprep.subr.mxu0 0.0
    %1944 = vmatpush1.msra.mxu0 0.0
    %1945 = vmatprep.subr.mxu0 0.0
    %1946 = vmatpush1.msra.mxu0 0.0
    %1947 = vmatprep.subr.mxu0 0.0
    %1948 = vmatpush1.msra.mxu0 0.0
    %1949 = vmatprep.subr.mxu0 0.0
    %1950 = vmatpush1.msra.mxu0 0.0
    %1951 = vmatprep.subr.mxu0 0.0
    %1952 = vmatpush1.msra.mxu0 0.0
    %1953 = vmatprep.subr.mxu0 0.0
    %1954 = vmatpush1.msra.mxu0 0.0
    %1955 = vmatprep.subr.mxu0 0.0
    %1956 = vmatpush1.msra.mxu0 0.0
    %1957 = vmatprep.subr.mxu0 0.0
    %1958 = vmatpush1.msra.mxu0 0.0
    %1959 = vmatprep.subr.mxu0 0.0
    %1960 = vmatpush1.msra.mxu0 0.0
    %1961 = vmatprep.subr.mxu0 0.0
    %1962 = vmatpush1.msra.mxu0 0.0
    %1963 = vmatprep.subr.mxu0 0.0
    %1964 = vmatpush1.msra.mxu0 0.0
    %1965 = vmatprep.subr.mxu0 0.0
    %1966 = vmatpush1.msra.mxu0 0.0
    %1967 = vmatprep.subr.mxu0 0.0
    %1968 = vmatpush1.msra.mxu0 0.0
    %1969 = vmatprep.subr.mxu0 0.0
    %1970 = vmatpush1.msra.mxu0 0.0
    %1971 = vmatprep.subr.mxu0 0.0
    %1972 = vmatpush1.msra.mxu0 0.0
    %1973 = vmatprep.subr.mxu0 0.0
    %1974 = vmatpush1.msra.mxu0 0.0
    %1975 = vmatprep.subr.mxu0 0.0
    %1976 = vmatpush1.msra.mxu0 0.0
    %1977 = vmatprep.subr.mxu0 0.0
    %1978 = vmatpush1.msra.mxu0 0.0
    %1979 = vmatprep.subr.mxu0 0.0
    %1980 = vmatpush1.msra.mxu0 0.0
    %1981 = vmatprep.subr.mxu0 0.0
    %1982 = vmatpush1.msra.mxu0 0.0
    %1983 = vmatprep.subr.mxu0 0.0
    %1984 = vmatpush1.msra.mxu0 0.0
    %1985 = vmatprep.subr.mxu0 0.0
    %1986 = vmatpush1.msra.mxu0 0.0
    %1987 = vmatprep.mubr.f32.mxu0 0.0
    %1988 = vmatmul.mubr.f32.gmra.mrb[0].mxu0 %v952
    %v1989 = vpop.f32.mrb[0].mxu0
    %v1990 = vadd.f32 0.0, %v1989
    %v1991 = vpop.f32.mrb[0].mxu0
    %1992 = vmatprep.mubr.f32.mxu0 0.0
    %1993 = vmatmul.mubr.f32.gmra.mrb[0].mxu0 %v955
    %v1994 = vpop.f32.mrb[0].mxu0
    %v1995 = vadd.f32 0.0, %v1994
    %v1996 = vpop.f32.mrb[0].mxu0
    %1997 = vmatprep.mubr.f32.mxu0 0.0
    %1998 = vmatmul.mubr.f32.gmra.mrb[0].mxu0 %v958
    %v1999 = vpop.f32.mrb[0].mxu0
    %v2000 = vadd.f32 0.0, %v1999
    %v2001 = vpop.f32.mrb[0].mxu0
    %2002 = vmatprep.mubr.f32.mxu0 0.0
    %2003 = vmatmul.mubr.f32.gmra.mrb[0].mxu0 %v961
    %v2004 = vpop.f32.mrb[0].mxu0
    %v2005 = vadd.f32 0.0, %v2004
    %v2006 = vpop.f32.mrb[0].mxu0
    %2007 = vdwg.mxu0
    %v2008 = vsel %vm480, %v1990, -inf
    %v2009 = vsel %vm480, %v1995, -inf
    %v2010 = vsel %vm480, %v2000, -inf
    %v2011 = vsel %vm480, %v2005, -inf
    %v2012 = vmax.f32 %v2008, %v2009
    %v2013 = vmax.f32 %v2010, %v2011
    %v2014 = vmax.f32 %v2012, %v2013
    %v2015 = vrot.slane %v2014, 4
    %v2016 = vmax.f32 %v2014, %v2015
    %v2017 = vrot.slane %v2016, 2
    %v2018 = vmax.f32 %v2016, %v2017
    %v2019 = vrot.slane %v2018, 1
    %v2020 = vmax.f32 %v2018, %v2019
    %v2021 = vsub.f32 %v1990, %v2020
    %v2022 = vsub.f32 %v1995, %v2020
    %v2023 = vsub.f32 %v2000, %v2020
    %v2024 = vsub.f32 %v2005, %v2020
    %v2025 = vmul.f32 %v2021, 1.442695
    %v2026 = vpow.pop %v2025
    %v2027 = vmul.f32 %v2022, 1.442695
    %v2028 = vpow.pop %v2027
    %v2029 = vmul.f32 %v2023, 1.442695
    %v2030 = vpow.pop %v2029
    %v2031 = vmul.f32 %v2024, 1.442695
    %v2032 = vpow.pop %v2031
    %v2033 = vsel %vm480, %v2026, 0.0
    %v2034 = vsel %vm480, %v2028, 0.0
    %v2035 = vadd.f32 %v2033, %v2034
    %v2036 = vsel %vm480, %v2030, 0.0
    %v2037 = vadd.f32 %v2035, %v2036
    %v2038 = vsel %vm480, %v2032, 0.0
    %v2039 = vadd.f32 %v2037, %v2038
    %v2040 = vrot.slane %v2039, 4
    %v2041 = vadd.f32 %v2039, %v2040
    %v2042 = vrot.slane %v2041, 2
    %v2043 = vadd.f32 %v2041, %v2042
    %v2044 = vrot.slane %v2043, 1
    %v2045 = vadd.f32 %v2043, %v2044
    %v2046 = vlog2.pop %v2045
    %v2047 = vmul.f32 %v2046, 0.6931472
    %v2048 = vsub.f32 %v2021, %v2047
    %v2049 = vsub.f32 %v2022, %v2047
    %v2050 = vsub.f32 %v2023, %v2047
    %v2051 = vsub.f32 %v2024, %v2047
    %v2052 = vmul.f32 %v2048, 1.442695
    %v2053 = vpow.pop %v2052
    %v2054 = vmul.f32 %v2049, 1.442695
    %v2055 = vpow.pop %v2054
    %v2056 = vmul.f32 %v2050, 1.442695
    %v2057 = vpow.pop %v2056
    %v2058 = vmul.f32 %v2051, 1.442695
    %v2059 = vpow.pop %v2058
    %2061 = vset.pattern.permute.xlu0 0
    %2062 = vperm.xlu0 %2061, %v2053
    %v2063 = vpop.permute.xlu0 %2062
    %2066 = vset.pattern.permute.xlu0 0
    %2067 = vperm.xlu0 %2066, %v2055
    %v2068 = vpop.permute.xlu0 %2067
    %2071 = vset.pattern.permute.xlu0 0
    %2072 = vperm.xlu0 %2071, %v2057
    %v2073 = vpop.permute.xlu0 %2072
    %2076 = vset.pattern.permute.xlu0 0
    %2077 = vperm.xlu0 %2076, %v2059
    %v2078 = vpop.permute.xlu0 %2077
    %v2080 = vmul.f32 %v2063, %v315
    %v2081 = vmul.f32 %v2063, %v316
    %v2082 = vmul.f32 %v2068, %v319
    %v2083 = vmul.f32 %v2068, %v320
    %v2084 = vmul.f32 %v2073, %v323
    %v2085 = vmul.f32 %v2073, %v324
    %v2086 = vmul.f32 %v2078, %v327
    %v2087 = vmul.f32 %v2078, %v328
    %v2088 = vadd.f32 %v2080, %v2082
    %v2089 = vadd.f32 %v2088, %v2084
    %v2090 = vadd.f32 %v2089, %v2086
    %v2091 = vrot.slane %v2090, 4
    %v2092 = vadd.f32 %v2090, %v2091
    %v2093 = vrot.slane %v2092, 2
    %v2094 = vadd.f32 %v2092, %v2093
    %v2095 = vrot.slane %v2094, 1
    %v2096 = vadd.f32 %v2094, %v2095
    %v2097 = vadd.f32 %v2081, %v2083
    %v2098 = vadd.f32 %v2097, %v2085
    %v2099 = vadd.f32 %v2098, %v2087
    %v2100 = vrot.slane %v2099, 4
    %v2101 = vadd.f32 %v2099, %v2100
    %v2102 = vrot.slane %v2101, 2
    %v2103 = vadd.f32 %v2101, %v2102
    %v2104 = vrot.slane %v2103, 1
    %v2105 = vadd.f32 %v2103, %v2104
    %2108 = vrot.lane.b32.xlu0 %v1471, 1
    %v2109 = vpop.permute.xlu0 %2108
    %2110 = vrot.lane.b32.xlu0 %v1476, 1
    %v2111 = vpop.permute.xlu0 %2110
    %vm2114 = vcmask 15368
    %2115 = vst.msk [vmem:[#allocation2] sm:$0xff] %vm2114, %v2109
    %2116 = vst.msk [vmem:[#allocation2 + $0x8] sm:$0xff] %vm2114, %v2111
    %v2117 = vmul.f32 %v1481, %v1148
    %v2118 = vmul.f32 %v1486, %v1148
    %v2119 = vsel %vm480, %v2117, -inf
    %v2120 = vsel %vm480, %v2118, -inf
    %v2121 = vmax.f32 %v2119, %v2120
    %v2122 = vrot.slane %v2121, 4
    %v2123 = vmax.f32 %v2121, %v2122
    %v2124 = vrot.slane %v2123, 2
    %v2125 = vmax.f32 %v2123, %v2124
    %v2126 = vrot.slane %v2125, 1
    %v2127 = vmax.f32 %v2125, %v2126
    %v2128 = vsub.f32 %v2117, %v2127
    %v2129 = vsub.f32 %v2118, %v2127
    %v2130 = vmul.f32 %v2128, 1.442695
    %v2131 = vpow.pop %v2130
    %v2132 = vmul.f32 %v2129, 1.442695
    %v2133 = vpow.pop %v2132
    %v2134 = vsel %vm480, %v2131, 0.0
    %v2135 = vsel %vm480, %v2133, 0.0
    %v2136 = vadd.f32 %v2134, %v2135
    %v2137 = vrot.slane %v2136, 4
    %v2138 = vadd.f32 %v2136, %v2137
    %v2139 = vrot.slane %v2138, 2
    %v2140 = vadd.f32 %v2138, %v2139
    %v2141 = vrot.slane %v2140, 1
    %v2142 = vadd.f32 %v2140, %v2141
    %v2143 = vlog2.pop %v2142
    %v2144 = vmul.f32 %v2143, 0.6931472
    %v2145 = vsub.f32 %v2128, %v2144
    %v2146 = vsub.f32 %v2129, %v2144
    %v2147 = vmul.f32 %v1832, %v1148
    %v2148 = vmul.f32 %v1837, %v1148
    %v2149 = vsel %vm480, %v2147, -inf
    %v2150 = vsel %vm480, %v2148, -inf
    %v2151 = vmax.f32 %v2149, %v2150
    %v2152 = vrot.slane %v2151, 4
    %v2153 = vmax.f32 %v2151, %v2152
    %v2154 = vrot.slane %v2153, 2
    %v2155 = vmax.f32 %v2153, %v2154
    %v2156 = vrot.slane %v2155, 1
    %v2157 = vmax.f32 %v2155, %v2156
    %v2158 = vsub.f32 %v2147, %v2157
    %v2159 = vsub.f32 %v2148, %v2157
    %v2160 = vmul.f32 %v2158, 1.442695
    %v2161 = vpow.pop %v2160
    %v2162 = vmul.f32 %v2159, 1.442695
    %v2163 = vpow.pop %v2162
    %v2164 = vsel %vm480, %v2161, 0.0
    %v2165 = vsel %vm480, %v2163, 0.0
    %v2166 = vadd.f32 %v2164, %v2165
    %v2167 = vrot.slane %v2166, 4
    %v2168 = vadd.f32 %v2166, %v2167
    %v2169 = vrot.slane %v2168, 2
    %v2170 = vadd.f32 %v2168, %v2169
    %v2171 = vrot.slane %v2170, 1
    %v2172 = vadd.f32 %v2170, %v2171
    %v2173 = vlog2.pop %v2172
    %v2174 = vmul.f32 %v2173, 0.6931472
    %v2175 = vsub.f32 %v2158, %v2174
    %v2176 = vsub.f32 %v2159, %v2174
    %v2177 = vmul.f32 %v2175, 1.442695
    %v2178 = vpow.pop %v2177
    %v2179 = vmul.f32 %v2176, 1.442695
    %v2180 = vpow.pop %v2179
    %v2181 = vsub.f32 %v2175, %v2145
    %v2182 = vsub.f32 %v2176, %v2146
    %v2183 = vmul.f32 %v2178, %v2181
    %v2184 = vmul.f32 %v2180, %v2182
    %v2185 = vsel %vm480, %v2183, 0.0
    %v2186 = vsel %vm480, %v2184, 0.0
    %v2187 = vadd.f32 %v2185, %v2186
    %2188 = vadd.xlane.f32.xlu0 %v2187
    %v2189 = vpop.xlane.xlu0 %2188
    %v2190 = vrot.slane %v2189, 4
    %v2191 = vadd.f32 %v2189, %v2190
    %v2192 = vrot.slane %v2191, 2
    %v2193 = vadd.f32 %v2191, %v2192
    %v2194 = vrot.slane %v2193, 1
    %v2195 = vadd.f32 %v2193, %v2194
    %s2196 = vtos %v2195
    %v2197 = vstv %s2196
    %v2198 = vadd.f32 %v1230, %v2197
    %v2199 = vmul.f32 %v1471, %v1148
    %v2200 = vmul.f32 %v1476, %v1148
    %v2201 = vmul.f32 %v1822, %v1148
    %v2202 = vmul.f32 %v1827, %v1148
    %v2203 = vxor.u32 %v2201, 2147483648
    %v2204 = vxor.u32 %v2202, 2147483648
    %v2205 = vmul.f32 %v2203, 1.442695
    %v2206 = vpow.pop %v2205
    %v2207 = vmul.f32 %v2204, 1.442695
    %v2208 = vpow.pop %v2207
    %v2209 = vadd.f32 %v2206, 1.0
    %v2210 = vadd.f32 %v2208, 1.0
    %v2211 = vrcp.pop %v2209
    %v2212 = vmul.f32 1.0, %v2211
    %v2213 = vrcp.pop %v2210
    %v2214 = vmul.f32 1.0, %v2213
    %v2215 = vsub.f32 0.0, %v2199
    %v2216 = vsub.f32 0.0, %v2200
    %v2217 = vmax.f32 %v2215, 0.0
    %v2218 = vmax.f32 %v2216, 0.0
    %v2219 = vand.u32 2147483647, %v2215
    %v2220 = vand.u32 2147483647, %v2216
    %v2221 = vsub.f32 0.0, %v2219
    %v2222 = vsub.f32 0.0, %v2220
    %v2223 = vmul.f32 %v2221, 1.442695
    %v2224 = vpow.pop %v2223
    %v2225 = vmul.f32 %v2222, 1.442695
    %v2226 = vpow.pop %v2225
    %v2227 = vadd.f32 %v2224, 1.0
    %v2228 = vadd.f32 %v2226, 1.0
    %v2229 = vlog2.pop %v2227
    %v2230 = vmul.f32 %v2229, 0.6931472
    %v2231 = vlog2.pop %v2228
    %v2232 = vmul.f32 %v2231, 0.6931472
    %v2233 = vadd.f32 %v2217, %v2230
    %v2234 = vadd.f32 %v2218, %v2232
    %v2235 = vsub.f32 0.0, %v2201
    %v2236 = vsub.f32 0.0, %v2202
    %v2237 = vmax.f32 %v2235, 0.0
    %v2238 = vmax.f32 %v2236, 0.0
    %v2239 = vand.u32 2147483647, %v2235
    %v2240 = vand.u32 2147483647, %v2236
    %v2241 = vsub.f32 0.0, %v2239
    %v2242 = vsub.f32 0.0, %v2240
    %v2243 = vmul.f32 %v2241, 1.442695
    %v2244 = vpow.pop %v2243
    %v2245 = vmul.f32 %v2242, 1.442695
    %v2246 = vpow.pop %v2245
    %v2247 = vadd.f32 %v2244, 1.0
    %v2248 = vadd.f32 %v2246, 1.0
    %v2249 = vlog2.pop %v2247
    %v2250 = vmul.f32 %v2249, 0.6931472
    %v2251 = vlog2.pop %v2248
    %v2252 = vmul.f32 %v2251, 0.6931472
    %v2253 = vadd.f32 %v2237, %v2250
    %v2254 = vadd.f32 %v2238, %v2252
    %v2255 = vsub.f32 %v2233, %v2253
    %v2256 = vsub.f32 %v2234, %v2254
    %v2257 = vmul.f32 %v2212, %v2255
    %v2258 = vmul.f32 %v2214, %v2256
    %v2259 = vsel %vm480, %v2257, 0.0
    %v2260 = vsel %vm480, %v2258, 0.0
    %v2261 = vadd.f32 %v2259, %v2260
    %2262 = vadd.xlane.f32.xlu0 %v2261
    %v2263 = vpop.xlane.xlu0 %2262
    %v2264 = vrot.slane %v2263, 4
    %v2265 = vadd.f32 %v2263, %v2264
    %v2266 = vrot.slane %v2265, 2
    %v2267 = vadd.f32 %v2265, %v2266
    %v2268 = vrot.slane %v2267, 1
    %v2269 = vadd.f32 %v2267, %v2268
    %s2270 = vtos %v2269
    %v2271 = vstv %s2270
    %v2272 = vadd.f32 %v1304, %v2271
    %v2273 = vsub.f32 1.0, %v2212
    %v2274 = vsub.f32 1.0, %v2214
    %v2275 = vmax.f32 %v2199, 0.0
    %v2276 = vmax.f32 %v2200, 0.0
    %v2277 = vand.u32 2147483647, %v2199
    %v2278 = vand.u32 2147483647, %v2200
    %v2279 = vsub.f32 0.0, %v2277
    %v2280 = vsub.f32 0.0, %v2278
    %v2281 = vmul.f32 %v2279, 1.442695
    %v2282 = vpow.pop %v2281
    %v2283 = vmul.f32 %v2280, 1.442695
    %v2284 = vpow.pop %v2283
    %v2285 = vadd.f32 %v2282, 1.0
    %v2286 = vadd.f32 %v2284, 1.0
    %v2287 = vlog2.pop %v2285
    %v2288 = vmul.f32 %v2287, 0.6931472
    %v2289 = vlog2.pop %v2286
    %v2290 = vmul.f32 %v2289, 0.6931472
    %v2291 = vadd.f32 %v2275, %v2288
    %v2292 = vadd.f32 %v2276, %v2290
    %v2293 = vmax.f32 %v2201, 0.0
    %v2294 = vmax.f32 %v2202, 0.0
    %v2295 = vand.u32 2147483647, %v2201
    %v2296 = vand.u32 2147483647, %v2202
    %v2297 = vsub.f32 0.0, %v2295
    %v2298 = vsub.f32 0.0, %v2296
    %v2299 = vmul.f32 %v2297, 1.442695
    %v2300 = vpow.pop %v2299
    %v2301 = vmul.f32 %v2298, 1.442695
    %v2302 = vpow.pop %v2301
    %v2303 = vadd.f32 %v2300, 1.0
    %v2304 = vadd.f32 %v2302, 1.0
    %v2305 = vlog2.pop %v2303
    %v2306 = vmul.f32 %v2305, 0.6931472
    %v2307 = vlog2.pop %v2304
    %v2308 = vmul.f32 %v2307, 0.6931472
    %v2309 = vadd.f32 %v2293, %v2306
    %v2310 = vadd.f32 %v2294, %v2308
    %v2311 = vsub.f32 %v2291, %v2309
    %v2312 = vsub.f32 %v2292, %v2310
    %v2313 = vmul.f32 %v2273, %v2311
    %v2314 = vmul.f32 %v2274, %v2312
    %v2315 = vsel %vm480, %v2313, 0.0
    %v2316 = vsel %vm480, %v2314, 0.0
    %v2317 = vadd.f32 %v2315, %v2316
    %2318 = vadd.xlane.f32.xlu0 %v2317
    %v2319 = vpop.xlane.xlu0 %2318
    %v2320 = vrot.slane %v2319, 4
    %v2321 = vadd.f32 %v2319, %v2320
    %v2322 = vrot.slane %v2321, 2
    %v2323 = vadd.f32 %v2321, %v2322
    %v2324 = vrot.slane %v2323, 1
    %v2325 = vadd.f32 %v2323, %v2324
    %s2326 = vtos %v2325
    %v2327 = vstv %s2326
    %v2328 = vadd.f32 %v1360, %v2327
    %v2329 = vsub.f32 %v1745, %v2096
    %v2330 = vsub.f32 %v1754, %v2105
    %v2331 = vmul.f32 %v2329, %v2329
    %v2332 = vmul.f32 %v2330, %v2330
    %v2333 = vsel %vm1365, %v2331, 0.0
    %v2334 = vsel %vm1365, %v2332, 0.0
    %v2335 = vadd.f32 %v2333, %v2334
    %2336 = vadd.xlane.f32.xlu0 %v2335
    %v2337 = vpop.xlane.xlu0 %2336
    %v2338 = vrot.slane %v2337, 4
    %v2339 = vadd.f32 %v2337, %v2338
    %v2340 = vrot.slane %v2339, 2
    %v2341 = vadd.f32 %v2339, %v2340
    %v2342 = vrot.slane %v2341, 1
    %v2343 = vadd.f32 %v2341, %v2342
    %s2344 = vtos %v2343
    %v2345 = vstv %s2344
    %v2346 = vadd.f32 %v1379, %v2345
    %v2347 = vmul.f32 %v2198, 9.0
    %v2348 = vadd.f32 %v2272, %v2328
    %v2349 = vmul.f32 %v2348, 0.5
    %v2350 = vmul.f32 %v2349, 9.0
    %v2351 = vrcp.pop 16.0
    %v2352 = vmul.f32 %v2350, %v2351
    %v2353 = vmul.f32 %v2346, 0.0001953125
    %v2354 = vadd.f32 %v2347, %v2352
    %v2355 = vmul.f32 %v2354, 0.5
    %v2356 = vadd.f32 %v2355, %v2353
    %vm2357 = vcmask 0
    %2358 = vst.msk [vmem:[#allocation2 + $0x10] sm:$0x1] %vm2357, %v2356
    // Predicated region
    $region14: #{tpu_custom_call.1} parent=1 // pred_check
      _
    $region15: #{tpu_custom_call.1} parent=1 // pred_check_branch
      %2360 = sbr.rel (0) target = $region17
    $region16: #{tpu_custom_call.1} parent=1 // pred_region
      %s2362 = ssub.s32 384, 384
      %2363 = vsyncadd [#allocation3], %s2362
      %s2364 = sshll.u32 [#allocation2], 4
      %s2365 = int_to_ptr.vmem [resolvable:$true] %s2364
      %2370 = dma.vmem_to_hbm [thread:$0]  %s2365, 384, %s3, [#allocation3], 128, 128, 8
    $region17: #{tpu_custom_call.1} parent=1 // pred_fallthru
      _
    // Predicated region
    $region18: #{tpu_custom_call.1} parent=1 // pred_check
      _
    $region19: #{tpu_custom_call.1} parent=1 // pred_check_branch
      %2372 = sbr.rel (0) target = $region21
    $region20: #{tpu_custom_call.1} parent=1 // pred_region
      %2373 = dma.done [#allocation3], 384
    $region21: #{tpu_custom_call.1} parent=1 // pred_fallthru
      _
    %2374 = vsyncpa [#allocation3], 1

</llo_original>
